<compile_context>
chip_gen: v7x
topology: tpu7x:2x2x1
jax: 0.10.0
libtpu: 0.0.40
codegen_flags: <defaults>
</compile_context>

<pallas_src>
import numpy as np
import jax
import jax.numpy as jnp
from jax.experimental import pallas as pl
from jax.experimental.pallas import tpu as pltpu

FLOAT_MIN = float(np.finfo(np.float32).min)  # matches rllib FLOAT_MIN

OBS_DIM = 120            # env_obs size (input_size = 120 + 120*4)
OPP_DIM = 120 * 4        # opponent obs size
HIDDEN = 256             # TorchFC default fcnet_hiddens
CENTRAL_HIDDEN = 128
NUM_OUTPUTS = 5          # action-logit / mask width (small synthetic choice)

OUT_WIDTH = 128          # lane-dense packed output slab width
VF_COL = OUT_WIDTH - 2   # column holding sub-model value_function()
CVF_COL = OUT_WIDTH - 1  # column holding central_value_function()
MASK_W = 8               # narrow on-HBM mask width (NUM_OUTPUTS padded to 8)

TB_CAP = 1024            # max batch tile (VMEM-safe on v7x with bf16)


def _round_up(x, m):
    return (x + m - 1) // m * m


def _cdiv(a, b):
    return (a + b - 1) // b


# --------------------------------------------------------------------------
# Fused kernel: policy + value + central-vf branches, one lane-dense output.
# --------------------------------------------------------------------------
def _fused_kernel(x_ref, opp_ref, mask_ref,
                  w1_ref, b1_ref, w1o_ref,
                  w2p_ref, b2p_ref, w2v_ref, b2v_ref,
                  wh_ref, bh_ref,
                  out_ref):
    x = x_ref[...]          # (TB, 120) bf16
    opp = opp_ref[...]      # (TB, 480) bf16

    # Fused first layer over shared env_obs (bf16 MXU, f32 accumulate):
    # columns [0,256)=policy, [256,512)=value, [512,640)=central (obs rows).
    pre = jnp.dot(x, w1_ref[...], preferred_element_type=jnp.float32) + b1_ref[...]
    pre_c = pre[:, 2 * HIDDEN:] + jnp.dot(
        opp, w1o_ref[...], preferred_element_type=jnp.float32)

    h1p = jnp.tanh(pre[:, :HIDDEN]).astype(jnp.bfloat16)
    h1v = jnp.tanh(pre[:, HIDDEN:2 * HIDDEN]).astype(jnp.bfloat16)
    hc = jnp.tanh(pre_c).astype(jnp.bfloat16)

    # Second hidden layers (policy / value branches).
    h2p = jnp.tanh(jnp.dot(h1p, w2p_ref[...], preferred_element_type=jnp.float32)
                   + b2p_ref[...]).astype(jnp.bfloat16)
    h2v = jnp.tanh(jnp.dot(h1v, w2v_ref[...], preferred_element_type=jnp.float32)
                   + b2v_ref[...]).astype(jnp.bfloat16)

    # Single fused head: [h2p | h2v | hc] (TB,640) x (640,128) -> one MXU pass.
    #   cols [0, NUM_OUTPUTS): logits, col VF_COL: value, col CVF_COL: central vf
    # (zero weight columns keep the branches exact).
    hcat = jnp.concatenate([h2p, h2v, hc], axis=1)
    out = jnp.dot(hcat, wh_ref[...], preferred_element_type=jnp.float32) + bh_ref[...]

    out_ref[...] = out

    # masked_logits = logits + clamp(log(mask), min=FLOAT_MIN), over the narrow
    # 8-wide mask only (mask padding columns hold 1.0 -> log == 0).  Applied as
    # a narrow masked store over the first MASK_W lanes of the slab.
    inf_mask = jnp.maximum(jnp.log(mask_ref[...]), FLOAT_MIN)      # (TB, 8) f32
    out_ref[:, :MASK_W] = out[:, :MASK_W] + inf_mask


def fused_forward(env_obs, opponent_obs, mask, packed):
    """Returns (masked_logits [B,NUM_OUTPUTS], value_fn [B], central_vf [B])."""
    (w1_all, b1_all, w1_opp, w2p, b2p, w2v, b2v, w_head, b_head) = packed

    B = env_obs.shape[0]
    # Minimal sublane alignment only (multiple of 8; a no-op for typical RL
    # batch sizes).  TB granularity is handled by Pallas partial blocks, so no
    # full zeros+scatter copy of x/opp is ever made.
    B8 = _round_up(B, 8)

    # bf16 activation streaming; the mask stays f32 (log / FLOAT_MIN path).
    x = env_obs.astype(jnp.bfloat16)        # .float() in torch; stored bf16 here
    opp = opponent_obs.astype(jnp.bfloat16)
    if B8 != B:
        x = jnp.pad(x, ((0, B8 - B), (0, 0)))
        opp = jnp.pad(opp, ((0, B8 - B), (0, 0)))
    # Narrow mask: pad 5 -> 8 columns (and tail rows) with 1.0 so log(pad) == 0.
    m = jnp.pad(mask.astype(jnp.float32),
                ((0, B8 - B), (0, MASK_W - NUM_OUTPUTS)), constant_values=1.0)

    # Batch tile: large enough to amortize per-step overhead, capped for v7x
    # VMEM; >=2 grid steps whenever possible so both v7x TensorCores get work.
    TB = min(TB_CAP, max(8, _round_up(_cdiv(B8, 2), 8)))
    grid = (_cdiv(B8, TB),)

    def act_spec(f):
        return pl.BlockSpec((TB, f), lambda i: (i, 0))

    def wgt_spec(a):
        # Pinned (grid-invariant) weight/bias block.
        return pl.BlockSpec(a.shape, lambda i: (0, 0))

    out = pl.pallas_call(
        _fused_kernel,
        out_shape=jax.ShapeDtypeStruct((B8, OUT_WIDTH), jnp.float32),
        grid=grid,
        in_specs=[act_spec(OBS_DIM), act_spec(OPP_DIM), act_spec(MASK_W),
                  wgt_spec(w1_all), wgt_spec(b1_all), wgt_spec(w1_opp),
                  wgt_spec(w2p), wgt_spec(b2p), wgt_spec(w2v), wgt_spec(b2v),
                  wgt_spec(w_head), wgt_spec(b_head)],
        out_specs=pl.BlockSpec((TB, OUT_WIDTH), lambda i: (i, 0)),
        compiler_params=pltpu.CompilerParams(
            dimension_semantics=("parallel",),
            vmem_limit_bytes=48 * 1024 * 1024),
    )(x, opp, m,
      w1_all, b1_all, w1_opp, w2p, b2p, w2v, b2v, w_head, b_head)

    masked_logits = out[:B, :NUM_OUTPUTS]
    vf = out[:B, VF_COL]       # torch.reshape(value_function(), [-1])
    cvf = out[:B, CVF_COL]     # torch.reshape(central_vf(...), [-1])
    return masked_logits, vf, cvf


# --------------------------------------------------------------------------
# Parameters: synthetic init (not a checkpoint) + one-time packing for kernel.
# --------------------------------------------------------------------------
def make_params(key):
    def dense(key, fan_in, fan_out):
        kw, kb = jax.random.split(key)
        scale = 1.0 / np.sqrt(fan_in)
        w = jax.random.uniform(kw, (fan_in, fan_out), jnp.float32, -scale, scale)
        b = jax.random.uniform(kb, (1, fan_out), jnp.float32, -scale, scale)
        return w, b

    keys = jax.random.split(key, 8)
    pw1, pb1 = dense(keys[0], OBS_DIM, HIDDEN)
    pw2, pb2 = dense(keys[1], HIDDEN, HIDDEN)
    pw3, pb3 = dense(keys[2], HIDDEN, NUM_OUTPUTS)
    vw1, vb1 = dense(keys[3], OBS_DIM, HIDDEN)
    vw2, vb2 = dense(keys[4], HIDDEN, HIDDEN)
    vw3, vb3 = dense(keys[5], HIDDEN, 1)
    cw1, cb1 = dense(keys[6], OBS_DIM + OPP_DIM, CENTRAL_HIDDEN)
    cw2, cb2 = dense(keys[7], CENTRAL_HIDDEN, 1)
    return ((pw1, pb1, pw2, pb2, pw3, pb3),
            (vw1, vb1, vw2, vb2, vw3, vb3),
            (cw1, cb1, cw2, cb2))


def pack_params(policy_params, value_params, central_params):
    """One-time host-side packing into the fused-kernel weight layout (bf16)."""
    pw1, pb1, pw2, pb2, pw3, pb3 = policy_params
    vw1, vb1, vw2, vb2, vw3, vb3 = value_params
    cw1, cb1, cw2, cb2 = central_params

    # Fused layer-1 over the shared env_obs input (policy | value | central-obs).
    w1_all = jnp.concatenate([pw1, vw1, cw1[:OBS_DIM, :]], axis=1)   # (120, 640)
    b1_all = jnp.concatenate([pb1, vb1, cb1], axis=1)                # (1, 640) f32
    w1_opp = cw1[OBS_DIM:, :]                                        # (480, 128)

    # Single fused head weight: rows [0,256)=policy h2, [256,512)=value h2,
    # [512,640)=central h1; columns packed lane-dense into the width-128 slab.
    w_head = jnp.zeros((2 * HIDDEN + CENTRAL_HIDDEN, OUT_WIDTH), jnp.float32)
    w_head = w_head.at[:HIDDEN, :NUM_OUTPUTS].set(pw3)
    w_head = w_head.at[HIDDEN:2 * HIDDEN, VF_COL].set(vw3[:, 0])
    w_head = w_head.at[2 * HIDDEN:, CVF_COL].set(cw2[:, 0])
    b_head = jnp.zeros((1, OUT_WIDTH), jnp.float32)
    b_head = (b_head.at[0, :NUM_OUTPUTS].set(pb3[0])
                    .at[0, VF_COL].set(vb3[0, 0])
                    .at[0, CVF_COL].set(cb2[0, 0]))

    bf16 = lambda a: a.astype(jnp.bfloat16)
    # Weights in bf16 (MXU rate + half DMA/VMEM); biases stay f32.
    return (bf16(w1_all), b1_all, bf16(w1_opp),
            bf16(pw2), pb2, bf16(vw2), vb2,
            bf16(w_head), b_head)


# --------------------------------------------------------------------------
# Plain-numpy reference of the torch module, mirroring the kernel's bf16
# storage (weights / streamed activations rounded to bf16, f64 accumulation).
# --------------------------------------------------------------------------
def np_reference(env_obs, opponent_obs, mask, policy_params, value_params, central_params):
    def q(a):  # bf16 storage round-trip, then compute in f64
        return np.asarray(jnp.asarray(a, jnp.float32).astype(jnp.bfloat16)
                          .astype(jnp.float32), np.float64)

    f64 = lambda a: np.asarray(a, np.float64)
    pw1, pb1, pw2, pb2, pw3, pb3 = policy_params
    vw1, vb1, vw2, vb2, vw3, vb3 = value_params
    cw1, cb1, cw2, cb2 = central_params

    x, opp, m = q(env_obs), q(opponent_obs), f64(mask)

    h1p = q(np.tanh(x @ q(pw1) + f64(pb1)))
    h2p = q(np.tanh(h1p @ q(pw2) + f64(pb2)))
    logits = h2p @ q(pw3) + f64(pb3)
    with np.errstate(divide="ignore"):
        inf_mask = np.maximum(np.log(m), FLOAT_MIN)
    masked = logits + inf_mask

    h1v = q(np.tanh(x @ q(vw1) + f64(vb1)))
    h2v = q(np.tanh(h1v @ q(vw2) + f64(vb2)))
    vf = (h2v @ q(vw3) + f64(vb3)).reshape(-1)

    hcin = np.concatenate([x, opp], axis=1)
    hc = q(np.tanh(hcin @ q(cw1) + f64(cb1)))
    cvf = (hc @ q(cw2) + f64(cb2)).reshape(-1)
    return (masked.astype(np.float32), vf.astype(np.float32), cvf.astype(np.float32))


if __name__ == "__main__":
    B = 2
    key = jax.random.PRNGKey(0)
    k_obs, k_opp, k_mask, k_par = jax.random.split(key, 4)

    env_obs = jax.random.normal(k_obs, (B, OBS_DIM), jnp.float32)
    opponent_obs = jax.random.normal(k_opp, (B, OPP_DIM), jnp.float32)
    # binary action mask with some zeros (exercises log(0) -> FLOAT_MIN clamp)
    mask = (jax.random.uniform(k_mask, (B, NUM_OUTPUTS)) > 0.3).astype(jnp.float32)
    mask = mask.at[:, 0].set(1.0)  # at least one valid action per row

    policy_params, value_params, central_params = make_params(k_par)
    packed = pack_params(policy_params, value_params, central_params)

    fwd = jax.jit(fused_forward)
    masked_logits, vf, cvf = fwd(env_obs, opponent_obs, mask, packed)
    jax.block_until_ready((masked_logits, vf, cvf))

    # Sanity check vs numpy reference (same bf16 weight/activation rounding).
    ref_logits, ref_vf, ref_cvf = np_reference(
        env_obs, opponent_obs, mask, policy_params, value_params, central_params)

    assert masked_logits.shape == (B, NUM_OUTPUTS)
    assert vf.shape == (B,) and cvf.shape == (B,)
    # Tolerance covers f32 accumulation order + hardware tanh differences.
    np.testing.assert_allclose(np.asarray(masked_logits), ref_logits, rtol=1e-2, atol=1e-2)
    np.testing.assert_allclose(np.asarray(vf), ref_vf, rtol=1e-2, atol=1e-2)
    np.testing.assert_allclose(np.asarray(cvf), ref_cvf, rtol=1e-2, atol=1e-2)

    print("KERNEL_OK")
</pallas_src>

<mosaic_0001>
module attributes {stable_mosaic.version = 11 : i64} {
  func.func @_fused_kernel(%arg0: i32, %arg1: memref<8x120xbf16, #tpu.memory_space<vmem>>, %arg2: memref<8x480xbf16, #tpu.memory_space<vmem>>, %arg3: memref<8x8xf32, #tpu.memory_space<vmem>>, %arg4: memref<120x640xbf16, #tpu.memory_space<vmem>>, %arg5: memref<1x640xf32, #tpu.memory_space<vmem>>, %arg6: memref<480x128xbf16, #tpu.memory_space<vmem>>, %arg7: memref<256x256xbf16, #tpu.memory_space<vmem>>, %arg8: memref<1x256xf32, #tpu.memory_space<vmem>>, %arg9: memref<256x256xbf16, #tpu.memory_space<vmem>>, %arg10: memref<1x256xf32, #tpu.memory_space<vmem>>, %arg11: memref<640x128xbf16, #tpu.memory_space<vmem>>, %arg12: memref<1x128xf32, #tpu.memory_space<vmem>>, %arg13: memref<8x128xf32, #tpu.memory_space<vmem>>) attributes {dimension_semantics = [#tpu.dimension_semantics<parallel>], iteration_bounds = array<i64: 1>, scalar_prefetch = 0 : i64, scratch_operands = 0 : i64, tpu.core_type = #tpu.core_type<tc>, window_params = [{transform_indices = @transform_0, window_bounds = array<i64: 8, 120>}, {transform_indices = @transform_1, window_bounds = array<i64: 8, 480>}, {transform_indices = @transform_2, window_bounds = array<i64: 8, 8>}, {pipeline_mode = #tpu.pipeline_mode<synchronous>, transform_indices = @transform_3, window_bounds = array<i64: 120, 640>}, {pipeline_mode = #tpu.pipeline_mode<synchronous>, transform_indices = @transform_4, window_bounds = array<i64: 1, 640>}, {pipeline_mode = #tpu.pipeline_mode<synchronous>, transform_indices = @transform_5, window_bounds = array<i64: 480, 128>}, {pipeline_mode = #tpu.pipeline_mode<synchronous>, transform_indices = @transform_6, window_bounds = array<i64: 256, 256>}, {pipeline_mode = #tpu.pipeline_mode<synchronous>, transform_indices = @transform_7, window_bounds = array<i64: 1, 256>}, {pipeline_mode = #tpu.pipeline_mode<synchronous>, transform_indices = @transform_8, window_bounds = array<i64: 256, 256>}, {pipeline_mode = #tpu.pipeline_mode<synchronous>, transform_indices = @transform_9, window_bounds = array<i64: 1, 256>}, {pipeline_mode = #tpu.pipeline_mode<synchronous>, transform_indices = @transform_10, window_bounds = array<i64: 640, 128>}, {pipeline_mode = #tpu.pipeline_mode<synchronous>, transform_indices = @transform_11, window_bounds = array<i64: 1, 128>}, {transform_indices = @transform_12, window_bounds = array<i64: 8, 128>}]} {
    %c0 = arith.constant 0 : index
    %c0_0 = arith.constant 0 : index
    %0 = vector.load %arg1[%c0, %c0_0] : memref<8x120xbf16, #tpu.memory_space<vmem>>, vector<8x120xbf16>
    %c0_1 = arith.constant 0 : index
    %c0_2 = arith.constant 0 : index
    %1 = vector.load %arg2[%c0_1, %c0_2] : memref<8x480xbf16, #tpu.memory_space<vmem>>, vector<8x480xbf16>
    %c0_3 = arith.constant 0 : index
    %c0_4 = arith.constant 0 : index
    %2 = vector.load %arg4[%c0_3, %c0_4] : memref<120x640xbf16, #tpu.memory_space<vmem>>, vector<120x640xbf16>
    %cst = arith.constant dense<0.000000e+00> : vector<8x640xf32>
    %3 = tpu.matmul %0, %2, %cst {dimension_numbers = #tpu.dot_dimension_numbers<[1], [0], [0], [1], [0, 0, 1, 1], [], []>} : vector<8x120xbf16>, vector<120x640xbf16>, vector<8x640xf32> -> vector<8x640xf32>
    %c0_5 = arith.constant 0 : index
    %c0_6 = arith.constant 0 : index
    %4 = vector.load %arg5[%c0_5, %c0_6] : memref<1x640xf32, #tpu.memory_space<vmem>>, vector<1x640xf32>
    %5 = vector.broadcast %4 : vector<1x640xf32> to vector<8x640xf32>
    %6 = arith.addf %3, %5 : vector<8x640xf32>
    %7 = vector.extract_strided_slice %6 {offsets = [0, 512], sizes = [8, 128], strides = [1, 1]} : vector<8x640xf32> to vector<8x128xf32>
    %c0_7 = arith.constant 0 : index
    %c0_8 = arith.constant 0 : index
    %8 = vector.load %arg6[%c0_7, %c0_8] : memref<480x128xbf16, #tpu.memory_space<vmem>>, vector<480x128xbf16>
    %cst_9 = arith.constant dense<0.000000e+00> : vector<8x128xf32>
    %9 = tpu.matmul %1, %8, %cst_9 {dimension_numbers = #tpu.dot_dimension_numbers<[1], [0], [0], [1], [0, 0, 1, 1], [], []>} : vector<8x480xbf16>, vector<480x128xbf16>, vector<8x128xf32> -> vector<8x128xf32>
    %10 = arith.addf %7, %9 : vector<8x128xf32>
    %11 = vector.extract_strided_slice %6 {offsets = [0, 0], sizes = [8, 256], strides = [1, 1]} : vector<8x640xf32> to vector<8x256xf32>
    %12 = math.tanh %11 : vector<8x256xf32>
    %13 = arith.truncf %12 : vector<8x256xf32> to vector<8x256xbf16>
    %14 = vector.extract_strided_slice %6 {offsets = [0, 256], sizes = [8, 256], strides = [1, 1]} : vector<8x640xf32> to vector<8x256xf32>
    %15 = math.tanh %14 : vector<8x256xf32>
    %16 = arith.truncf %15 : vector<8x256xf32> to vector<8x256xbf16>
    %17 = math.tanh %10 : vector<8x128xf32>
    %18 = arith.truncf %17 : vector<8x128xf32> to vector<8x128xbf16>
    %c0_10 = arith.constant 0 : index
    %c0_11 = arith.constant 0 : index
    %19 = vector.load %arg7[%c0_10, %c0_11] : memref<256x256xbf16, #tpu.memory_space<vmem>>, vector<256x256xbf16>
    %cst_12 = arith.constant dense<0.000000e+00> : vector<8x256xf32>
    %20 = tpu.matmul %13, %19, %cst_12 {dimension_numbers = #tpu.dot_dimension_numbers<[1], [0], [0], [1], [0, 0, 1, 1], [], []>} : vector<8x256xbf16>, vector<256x256xbf16>, vector<8x256xf32> -> vector<8x256xf32>
    %c0_13 = arith.constant 0 : index
    %c0_14 = arith.constant 0 : index
    %21 = vector.load %arg8[%c0_13, %c0_14] : memref<1x256xf32, #tpu.memory_space<vmem>>, vector<1x256xf32>
    %22 = vector.broadcast %21 : vector<1x256xf32> to vector<8x256xf32>
    %23 = arith.addf %20, %22 : vector<8x256xf32>
    %24 = math.tanh %23 : vector<8x256xf32>
    %25 = arith.truncf %24 : vector<8x256xf32> to vector<8x256xbf16>
    %c0_15 = arith.constant 0 : index
    %c0_16 = arith.constant 0 : index
    %26 = vector.load %arg9[%c0_15, %c0_16] : memref<256x256xbf16, #tpu.memory_space<vmem>>, vector<256x256xbf16>
    %cst_17 = arith.constant dense<0.000000e+00> : vector<8x256xf32>
    %27 = tpu.matmul %16, %26, %cst_17 {dimension_numbers = #tpu.dot_dimension_numbers<[1], [0], [0], [1], [0, 0, 1, 1], [], []>} : vector<8x256xbf16>, vector<256x256xbf16>, vector<8x256xf32> -> vector<8x256xf32>
    %c0_18 = arith.constant 0 : index
    %c0_19 = arith.constant 0 : index
    %28 = vector.load %arg10[%c0_18, %c0_19] : memref<1x256xf32, #tpu.memory_space<vmem>>, vector<1x256xf32>
    %29 = vector.broadcast %28 : vector<1x256xf32> to vector<8x256xf32>
    %30 = arith.addf %27, %29 : vector<8x256xf32>
    %31 = math.tanh %30 : vector<8x256xf32>
    %32 = arith.truncf %31 : vector<8x256xf32> to vector<8x256xbf16>
    %33 = tpu.concatenate %25, %32, %18 in 1 : vector<8x256xbf16>, vector<8x256xbf16>, vector<8x128xbf16> -> vector<8x640xbf16>
    %c0_20 = arith.constant 0 : index
    %c0_21 = arith.constant 0 : index
    %34 = vector.load %arg11[%c0_20, %c0_21] : memref<640x128xbf16, #tpu.memory_space<vmem>>, vector<640x128xbf16>
    %cst_22 = arith.constant dense<0.000000e+00> : vector<8x128xf32>
    %35 = tpu.matmul %33, %34, %cst_22 {dimension_numbers = #tpu.dot_dimension_numbers<[1], [0], [0], [1], [0, 0, 1, 1], [], []>} : vector<8x640xbf16>, vector<640x128xbf16>, vector<8x128xf32> -> vector<8x128xf32>
    %c0_23 = arith.constant 0 : index
    %c0_24 = arith.constant 0 : index
    %36 = vector.load %arg12[%c0_23, %c0_24] : memref<1x128xf32, #tpu.memory_space<vmem>>, vector<1x128xf32>
    %37 = vector.broadcast %36 : vector<1x128xf32> to vector<8x128xf32>
    %38 = arith.addf %35, %37 : vector<8x128xf32>
    %c0_25 = arith.constant 0 : index
    %c0_26 = arith.constant 0 : index
    %39 = vector.load %arg13[%c0_25, %c0_26] : memref<8x128xf32, #tpu.memory_space<vmem>>, vector<8x128xf32>
    tpu.vector_store %arg13[%c0_25, %c0_26], %38 {strides = array<i32>} : memref<8x128xf32, #tpu.memory_space<vmem>>, vector<8x128xf32>,
    %c0_27 = arith.constant 0 : index
    %c0_28 = arith.constant 0 : index
    %40 = vector.load %arg3[%c0_27, %c0_28] : memref<8x8xf32, #tpu.memory_space<vmem>>, vector<8x8xf32>
    %41 = math.log %40 : vector<8x8xf32>
    %cst_29 = arith.constant -3.40282347E+38 : f32
    %42 = vector.broadcast %cst_29 : f32 to vector<8x8xf32>
    %43 = arith.maximumf %41, %42 : vector<8x8xf32>
    %44 = vector.extract_strided_slice %38 {offsets = [0, 0], sizes = [8, 8], strides = [1, 1]} : vector<8x128xf32> to vector<8x8xf32>
    %45 = arith.addf %44, %43 : vector<8x8xf32>
    %c0_30 = arith.constant 0 : index
    %c0_31 = arith.constant 0 : index
    %46 = vector.load %arg13[%c0_30, %c0_31] : memref<8x128xf32, #tpu.memory_space<vmem>>, vector<8x8xf32>
    tpu.vector_store %arg13[%c0_30, %c0_31], %45 {strides = array<i32>} : memref<8x128xf32, #tpu.memory_space<vmem>>, vector<8x8xf32>,
    return
  }
  func.func @transform_0(%arg0: i32) -> (i32, i32) {
    %c0_i32 = arith.constant 0 : i32
    %c0_i32_0 = arith.constant 0 : i32
    return %arg0, %c0_i32 : i32, i32
  }
  func.func @transform_1(%arg0: i32) -> (i32, i32) {
    %c0_i32 = arith.constant 0 : i32
    %c0_i32_0 = arith.constant 0 : i32
    return %arg0, %c0_i32 : i32, i32
  }
  func.func @transform_2(%arg0: i32) -> (i32, i32) {
    %c0_i32 = arith.constant 0 : i32
    %c0_i32_0 = arith.constant 0 : i32
    return %arg0, %c0_i32 : i32, i32
  }
  func.func @transform_3(%arg0: i32) -> (i32, i32) {
    %c0_i32 = arith.constant 0 : i32
    %c0_i32_0 = arith.constant 0 : i32
    %c0_i32_1 = arith.constant 0 : i32
    return %c0_i32, %c0_i32_0 : i32, i32
  }
  func.func @transform_4(%arg0: i32) -> (i32, i32) {
    %c0_i32 = arith.constant 0 : i32
    %c0_i32_0 = arith.constant 0 : i32
    %c0_i32_1 = arith.constant 0 : i32
    return %c0_i32, %c0_i32_0 : i32, i32
  }
  func.func @transform_5(%arg0: i32) -> (i32, i32) {
    %c0_i32 = arith.constant 0 : i32
    %c0_i32_0 = arith.constant 0 : i32
    %c0_i32_1 = arith.constant 0 : i32
    return %c0_i32, %c0_i32_0 : i32, i32
  }
  func.func @transform_6(%arg0: i32) -> (i32, i32) {
    %c0_i32 = arith.constant 0 : i32
    %c0_i32_0 = arith.constant 0 : i32
    %c0_i32_1 = arith.constant 0 : i32
    return %c0_i32, %c0_i32_0 : i32, i32
  }
  func.func @transform_7(%arg0: i32) -> (i32, i32) {
    %c0_i32 = arith.constant 0 : i32
    %c0_i32_0 = arith.constant 0 : i32
    %c0_i32_1 = arith.constant 0 : i32
    return %c0_i32, %c0_i32_0 : i32, i32
  }
  func.func @transform_8(%arg0: i32) -> (i32, i32) {
    %c0_i32 = arith.constant 0 : i32
    %c0_i32_0 = arith.constant 0 : i32
    %c0_i32_1 = arith.constant 0 : i32
    return %c0_i32, %c0_i32_0 : i32, i32
  }
  func.func @transform_9(%arg0: i32) -> (i32, i32) {
    %c0_i32 = arith.constant 0 : i32
    %c0_i32_0 = arith.constant 0 : i32
    %c0_i32_1 = arith.constant 0 : i32
    return %c0_i32, %c0_i32_0 : i32, i32
  }
  func.func @transform_10(%arg0: i32) -> (i32, i32) {
    %c0_i32 = arith.constant 0 : i32
    %c0_i32_0 = arith.constant 0 : i32
    %c0_i32_1 = arith.constant 0 : i32
    return %c0_i32, %c0_i32_0 : i32, i32
  }
  func.func @transform_11(%arg0: i32) -> (i32, i32) {
    %c0_i32 = arith.constant 0 : i32
    %c0_i32_0 = arith.constant 0 : i32
    %c0_i32_1 = arith.constant 0 : i32
    return %c0_i32, %c0_i32_0 : i32, i32
  }
  func.func @transform_12(%arg0: i32) -> (i32, i32) {
    %c0_i32 = arith.constant 0 : i32
    %c0_i32_0 = arith.constant 0 : i32
    return %arg0, %c0_i32 : i32, i32
  }
}

</mosaic_0001>

<llo_original>
// kernel: fused_forward.1
$region0: #{fused_forward.1}
  #allocation0 [shape = 'u32[]', space=smem, size = 0x4, offset = 0x4, fixed_abs, tag = 'smem constant byte address 0x4 - core index']
  #allocation1 [shape = 'u32[144,128]{1,0:T(1,128)}', space=vmem, size = 0x12000, scoped, tag = 'internal scratch']
  %s0 = inlined_call_operand.vmem [shape: bf16[8,120], index: 0, kind: input, shape index: {}]
  %s1 = inlined_call_operand.vmem [shape: bf16[8,480], index: 1, kind: input, shape index: {}]
  %s2 = inlined_call_operand.vmem [shape: f32[8,8], index: 2, kind: input, shape index: {}]
  %s3 = inlined_call_operand.hbm [shape: bf16[120,640], index: 3, kind: input, shape index: {}]
  %s4 = inlined_call_operand.vmem [shape: f32[1,640], index: 4, kind: input, shape index: {}]
  %s5 = inlined_call_operand.hbm [shape: bf16[480,128], index: 5, kind: input, shape index: {}]
  %s6 = inlined_call_operand.hbm [shape: bf16[256,256], index: 6, kind: input, shape index: {}]
  %s7 = inlined_call_operand.vmem [shape: f32[1,256], index: 7, kind: input, shape index: {}]
  %s8 = inlined_call_operand.hbm [shape: bf16[256,256], index: 8, kind: input, shape index: {}]
  %s9 = inlined_call_operand.vmem [shape: f32[1,256], index: 9, kind: input, shape index: {}]
  %s10 = inlined_call_operand.hbm [shape: bf16[640,128], index: 10, kind: input, shape index: {}]
  %s11 = inlined_call_operand.vmem [shape: f32[1,128], index: 11, kind: input, shape index: {}]
  %s12 = inlined_call_operand.vmem [shape: f32[8,128], index: 12, kind: output, shape index: {}]
  %s13 = sld [smem:[#allocation0]]
  $region78: #{fused_forward.1} parent=0
    _
  %s15 = ssub.s32 1, %s13
  %s16 = scalar_select 0, %s15, %s13
  $region1: #{fused_forward.1} parent=0
    #allocation2 [shape = 'u8[153600]{0}', space=vmem, size = 0x25800, scoped, tag = 'input window, operand 3, single buffered']
    #allocation3 [shape = 's32[1]{0}', space=sflag, size = 0x4, scoped, tag = 'scoped memory for fused_forward.1']
    #allocation4 [shape = 'u8[122880]{0}', space=vmem, size = 0x1e000, scoped, tag = 'input window, operand 5, single buffered']
    #allocation5 [shape = 's32[1]{0}', space=sflag, size = 0x4, scoped, tag = 'scoped memory for fused_forward.1']
    #allocation6 [shape = 'u8[131072]{0}', space=vmem, size = 0x20000, scoped, tag = 'input window, operand 6, single buffered']
    #allocation7 [shape = 'u8[131072]{0}', space=vmem, size = 0x20000, scoped, tag = 'input window, operand 8, single buffered']
    #allocation8 [shape = 's32[1]{0}', space=sflag, size = 0x4, scoped, tag = 'scoped memory for fused_forward.1']
    #allocation9 [shape = 'u8[163840]{0}', space=vmem, size = 0x28000, scoped, tag = 'input window, operand 10, single buffered']
    %17 = vsyncpa [#allocation3], 0
    %18 = vsyncpa [#allocation5], 0
    %19 = vsyncpa [#allocation8], 0
    // Predicated region
    $region2: #{fused_forward.1} parent=1 // pred_check
      _
    $region3: #{fused_forward.1} parent=1 // pred_check_branch
      %21 = sbr.rel (0) target = $region5
    $region4: #{fused_forward.1} parent=1 // pred_region
      _
    $region5: #{fused_forward.1} parent=1 // pred_fallthru
      _
    // Predicated region
    $region6: #{fused_forward.1} parent=1 // pred_check
      _
    $region7: #{fused_forward.1} parent=1 // pred_check_branch
      %23 = sbr.rel (0) target = $region9
    $region8: #{fused_forward.1} parent=1 // pred_region
      _
    $region9: #{fused_forward.1} parent=1 // pred_fallthru
      _
    // Predicated region
    $region10: #{fused_forward.1} parent=1 // pred_check
      _
    $region11: #{fused_forward.1} parent=1 // pred_check_branch
      %25 = sbr.rel (0) target = $region13
    $region12: #{fused_forward.1} parent=1 // pred_region
      _
    $region13: #{fused_forward.1} parent=1 // pred_fallthru
      _
    // Predicated region
    $region14: #{fused_forward.1} parent=1 // pred_check
      _
    $region15: #{fused_forward.1} parent=1 // pred_check_branch
      %27 = sbr.rel (0) target = $region17
    $region16: #{fused_forward.1} parent=1 // pred_region
      %s29 = ssub.s32 4800, 4800
      %30 = vsyncadd [#allocation3], %s29
      %s31 = sshll.u32 [#allocation2], 4
      %s32 = int_to_ptr.vmem [resolvable:$true] %s31
      %37 = dma.hbm_to_vmem [thread:$0]  %s3, 4800, %s32, [#allocation3], 320, 320, 20
    $region17: #{fused_forward.1} parent=1 // pred_fallthru
      _
    // Predicated region
    $region18: #{fused_forward.1} parent=1 // pred_check
      _
    $region19: #{fused_forward.1} parent=1 // pred_check_branch
      %39 = sbr.rel (0) target = $region21
    $region20: #{fused_forward.1} parent=1 // pred_region
      _
    $region21: #{fused_forward.1} parent=1 // pred_fallthru
      _
    // Predicated region
    $region22: #{fused_forward.1} parent=1 // pred_check
      _
    $region23: #{fused_forward.1} parent=1 // pred_check_branch
      %41 = sbr.rel (0) target = $region25
    $region24: #{fused_forward.1} parent=1 // pred_region
      %s43 = ssub.s32 3840, 3840
      %44 = vsyncadd [#allocation5], %s43
      %s45 = sshll.u32 [#allocation4], 4
      %s46 = int_to_ptr.vmem [resolvable:$true] %s45
      %51 = dma.hbm_to_vmem [thread:$0]  %s5, 3840, %s46, [#allocation5], 64, 64, 4
    $region25: #{fused_forward.1} parent=1 // pred_fallthru
      _
    // Predicated region
    $region26: #{fused_forward.1} parent=1 // pred_check
      _
    $region27: #{fused_forward.1} parent=1 // pred_check_branch
      %53 = sbr.rel (0) target = $region29
    $region28: #{fused_forward.1} parent=1 // pred_region
      %s55 = ssub.s32 4096, 4096
      %56 = vsyncadd [#allocation5], %s55
      %s57 = sshll.u32 [#allocation6], 4
      %s58 = int_to_ptr.vmem [resolvable:$true] %s57
      %63 = dma.hbm_to_vmem [thread:$0]  %s6, 4096, %s58, [#allocation5], 128, 128, 8
    $region29: #{fused_forward.1} parent=1 // pred_fallthru
      _
    // Predicated region
    $region30: #{fused_forward.1} parent=1 // pred_check
      _
    $region31: #{fused_forward.1} parent=1 // pred_check_branch
      %65 = sbr.rel (0) target = $region33
    $region32: #{fused_forward.1} parent=1 // pred_region
      _
    $region33: #{fused_forward.1} parent=1 // pred_fallthru
      _
    // Predicated region
    $region34: #{fused_forward.1} parent=1 // pred_check
      _
    $region35: #{fused_forward.1} parent=1 // pred_check_branch
      %67 = sbr.rel (0) target = $region37
    $region36: #{fused_forward.1} parent=1 // pred_region
      %s69 = ssub.s32 4096, 4096
      %70 = vsyncadd [#allocation8], %s69
      %s71 = sshll.u32 [#allocation7], 4
      %s72 = int_to_ptr.vmem [resolvable:$true] %s71
      %77 = dma.hbm_to_vmem [thread:$0]  %s8, 4096, %s72, [#allocation8], 128, 128, 8
    $region37: #{fused_forward.1} parent=1 // pred_fallthru
      _
    // Predicated region
    $region38: #{fused_forward.1} parent=1 // pred_check
      _
    $region39: #{fused_forward.1} parent=1 // pred_check_branch
      %79 = sbr.rel (0) target = $region41
    $region40: #{fused_forward.1} parent=1 // pred_region
      _
    $region41: #{fused_forward.1} parent=1 // pred_fallthru
      _
    // Predicated region
    $region42: #{fused_forward.1} parent=1 // pred_check
      _
    $region43: #{fused_forward.1} parent=1 // pred_check_branch
      %81 = sbr.rel (0) target = $region45
    $region44: #{fused_forward.1} parent=1 // pred_region
      %s83 = ssub.s32 5120, 5120
      %84 = vsyncadd [#allocation8], %s83
      %s85 = sshll.u32 [#allocation9], 4
      %s86 = int_to_ptr.vmem [resolvable:$true] %s85
      %91 = dma.hbm_to_vmem [thread:$0]  %s10, 5120, %s86, [#allocation8], 64, 64, 4
    $region45: #{fused_forward.1} parent=1 // pred_fallthru
      _
    // Predicated region
    $region46: #{fused_forward.1} parent=1 // pred_check
      _
    $region47: #{fused_forward.1} parent=1 // pred_check_branch
      %93 = sbr.rel (0) target = $region49
    $region48: #{fused_forward.1} parent=1 // pred_region
      _
    $region49: #{fused_forward.1} parent=1 // pred_fallthru
      _
    // Predicated region
    $region50: #{fused_forward.1} parent=1 // pred_check
      _
    $region51: #{fused_forward.1} parent=1 // pred_check_branch
      %95 = sbr.rel (0) target = $region53
    $region52: #{fused_forward.1} parent=1 // pred_region
      %96 = dma.done [#allocation3], 4800
    $region53: #{fused_forward.1} parent=1 // pred_fallthru
      _
    // Predicated region
    $region54: #{fused_forward.1} parent=1 // pred_check
      _
    $region55: #{fused_forward.1} parent=1 // pred_check_branch
      %98 = sbr.rel (0) target = $region57
    $region56: #{fused_forward.1} parent=1 // pred_region
      %99 = dma.done [#allocation5], 3840
    $region57: #{fused_forward.1} parent=1 // pred_fallthru
      _
    // Predicated region
    $region58: #{fused_forward.1} parent=1 // pred_check
      _
    $region59: #{fused_forward.1} parent=1 // pred_check_branch
      %101 = sbr.rel (0) target = $region61
    $region60: #{fused_forward.1} parent=1 // pred_region
      %102 = dma.done [#allocation5], 4096
    $region61: #{fused_forward.1} parent=1 // pred_fallthru
      _
    // Predicated region
    $region62: #{fused_forward.1} parent=1 // pred_check
      _
    $region63: #{fused_forward.1} parent=1 // pred_check_branch
      %104 = sbr.rel (0) target = $region65
    $region64: #{fused_forward.1} parent=1 // pred_region
      %105 = dma.done [#allocation8], 4096
    $region65: #{fused_forward.1} parent=1 // pred_fallthru
      _
    // Predicated region
    $region66: #{fused_forward.1} parent=1 // pred_check
      _
    $region67: #{fused_forward.1} parent=1 // pred_check_branch
      %107 = sbr.rel (0) target = $region69
    $region68: #{fused_forward.1} parent=1 // pred_region
      %108 = dma.done [#allocation8], 5120
    $region69: #{fused_forward.1} parent=1 // pred_fallthru
      _
    %v110 = vld [vmem:[%s0] sm:$0xf]
    %v111 = vld [vmem:[%s1] sm:$0xff]
    %v112 = vld [vmem:[%s1 + $0x8] sm:$0xff]
    %v113 = vld [vmem:[#allocation2] sm:$0xff]
    %v114 = vld [vmem:[#allocation2 + $0x8] sm:$0xff]
    %v115 = vld [vmem:[#allocation2 + $0x10] sm:$0xf]
    %v116 = vld [vmem:[#allocation2 + $0x14] sm:$0xff]
    %v117 = vld [vmem:[#allocation2 + $0x1c] sm:$0xff]
    %v118 = vld [vmem:[#allocation2 + $0x24] sm:$0xf]
    %v119 = vld [vmem:[#allocation2 + $0x28] sm:$0xff]
    %v120 = vld [vmem:[#allocation2 + $0x30] sm:$0xff]
    %v121 = vld [vmem:[#allocation2 + $0x38] sm:$0xf]
    %v122 = vld [vmem:[#allocation2 + $0x3c] sm:$0xff]
    %v123 = vld [vmem:[#allocation2 + $0x44] sm:$0xff]
    %v124 = vld [vmem:[#allocation2 + $0x4c] sm:$0xf]
    %v125 = vld [vmem:[#allocation2 + $0x50] sm:$0xff]
    %v126 = vld [vmem:[#allocation2 + $0x58] sm:$0xff]
    %v127 = vld [vmem:[#allocation2 + $0x60] sm:$0xf]
    %v128 = vld [vmem:[#allocation2 + $0x64] sm:$0xff]
    %v129 = vld [vmem:[#allocation2 + $0x6c] sm:$0xff]
    %v130 = vld [vmem:[#allocation2 + $0x74] sm:$0xf]
    %v131 = vld [vmem:[#allocation2 + $0x78] sm:$0xff]
    %v132 = vld [vmem:[#allocation2 + $0x80] sm:$0xff]
    %v133 = vld [vmem:[#allocation2 + $0x88] sm:$0xf]
    %v134 = vld [vmem:[#allocation2 + $0x8c] sm:$0xff]
    %v135 = vld [vmem:[#allocation2 + $0x94] sm:$0xff]
    %v136 = vld [vmem:[#allocation2 + $0x9c] sm:$0xf]
    %v137 = vld [vmem:[#allocation2 + $0xa0] sm:$0xff]
    %v138 = vld [vmem:[#allocation2 + $0xa8] sm:$0xff]
    %v139 = vld [vmem:[#allocation2 + $0xb0] sm:$0xf]
    %v140 = vld [vmem:[#allocation2 + $0xb4] sm:$0xff]
    %v141 = vld [vmem:[#allocation2 + $0xbc] sm:$0xff]
    %v142 = vld [vmem:[#allocation2 + $0xc4] sm:$0xf]
    %v143 = vld [vmem:[#allocation2 + $0xc8] sm:$0xff]
    %v144 = vld [vmem:[#allocation2 + $0xd0] sm:$0xff]
    %v145 = vld [vmem:[#allocation2 + $0xd8] sm:$0xf]
    %v146 = vld [vmem:[#allocation2 + $0xdc] sm:$0xff]
    %v147 = vld [vmem:[#allocation2 + $0xe4] sm:$0xff]
    %v148 = vld [vmem:[#allocation2 + $0xec] sm:$0xf]
    %v149 = vld [vmem:[#allocation2 + $0xf0] sm:$0xff]
    %v150 = vld [vmem:[#allocation2 + $0xf8] sm:$0xff]
    %v151 = vld [vmem:[#allocation2 + $0x100] sm:$0xf]
    %v152 = vld [vmem:[#allocation2 + $0x104] sm:$0xff]
    %v153 = vld [vmem:[#allocation2 + $0x10c] sm:$0xff]
    %v154 = vld [vmem:[#allocation2 + $0x114] sm:$0xf]
    %v155 = vld [vmem:[#allocation2 + $0x118] sm:$0xff]
    %v156 = vld [vmem:[#allocation2 + $0x120] sm:$0xff]
    %v157 = vld [vmem:[#allocation2 + $0x128] sm:$0xf]
    %v158 = vld [vmem:[%s4] sm:$0x1f]
    %v160 = vlaneseq
    %v161 = vshrl.u32 %v160, 7
    %v162 = vsub.s32 0, %v161
    %v163 = vrot.slane %v158, %v162
    %v164 = vlaneseq
    %v165 = vshrl.u32 %v164, 7
    %v166 = vsub.s32 1, %v165
    %v167 = vrot.slane %v158, %v166
    %v168 = vlaneseq
    %v169 = vshrl.u32 %v168, 7
    %v170 = vsub.s32 2, %v169
    %v171 = vrot.slane %v158, %v170
    %v172 = vlaneseq
    %v173 = vshrl.u32 %v172, 7
    %v174 = vsub.s32 3, %v173
    %v175 = vrot.slane %v158, %v174
    %v176 = vlaneseq
    %v177 = vshrl.u32 %v176, 7
    %v178 = vsub.s32 4, %v177
    %v179 = vrot.slane %v158, %v178
    %v230 = vunpack.c.l.b16 %v113
    %v231 = vunpack.c.h.b16 %v113
    %v232 = vunpack.c.l.b16 %v114
    %v233 = vunpack.c.h.b16 %v114
    %v234 = vunpack.c.l.b16 %v115
    %v235 = vunpack.c.l.b16 %v116
    %v236 = vunpack.c.h.b16 %v116
    %v237 = vunpack.c.l.b16 %v117
    %v238 = vunpack.c.h.b16 %v117
    %v239 = vunpack.c.l.b16 %v118
    %v240 = vunpack.c.l.b16 %v119
    %v241 = vunpack.c.h.b16 %v119
    %v242 = vunpack.c.l.b16 %v120
    %v243 = vunpack.c.h.b16 %v120
    %v244 = vunpack.c.l.b16 %v121
    %v245 = vunpack.c.l.b16 %v122
    %v246 = vunpack.c.h.b16 %v122
    %v247 = vunpack.c.l.b16 %v123
    %v248 = vunpack.c.h.b16 %v123
    %v249 = vunpack.c.l.b16 %v124
    %v250 = vunpack.c.l.b16 %v125
    %v251 = vunpack.c.h.b16 %v125
    %v252 = vunpack.c.l.b16 %v126
    %v253 = vunpack.c.h.b16 %v126
    %v254 = vunpack.c.l.b16 %v127
    %v255 = vunpack.c.l.b16 %v128
    %v256 = vunpack.c.h.b16 %v128
    %v257 = vunpack.c.l.b16 %v129
    %v258 = vunpack.c.h.b16 %v129
    %v259 = vunpack.c.l.b16 %v130
    %v260 = vunpack.c.l.b16 %v131
    %v261 = vunpack.c.h.b16 %v131
    %v262 = vunpack.c.l.b16 %v132
    %v263 = vunpack.c.h.b16 %v132
    %v264 = vunpack.c.l.b16 %v133
    %v265 = vunpack.c.l.b16 %v134
    %v266 = vunpack.c.h.b16 %v134
    %v267 = vunpack.c.l.b16 %v135
    %v268 = vunpack.c.h.b16 %v135
    %v269 = vunpack.c.l.b16 %v136
    %v270 = vunpack.c.l.b16 %v137
    %v271 = vunpack.c.h.b16 %v137
    %v272 = vunpack.c.l.b16 %v138
    %v273 = vunpack.c.h.b16 %v138
    %v274 = vunpack.c.l.b16 %v139
    %v275 = vunpack.c.l.b16 %v140
    %v276 = vunpack.c.h.b16 %v140
    %v277 = vunpack.c.l.b16 %v141
    %v278 = vunpack.c.h.b16 %v141
    %v279 = vunpack.c.l.b16 %v142
    %v280 = vunpack.c.l.b16 %v143
    %v281 = vunpack.c.h.b16 %v143
    %v282 = vunpack.c.l.b16 %v144
    %v283 = vunpack.c.h.b16 %v144
    %v284 = vunpack.c.l.b16 %v145
    %v285 = vunpack.c.l.b16 %v146
    %v286 = vunpack.c.h.b16 %v146
    %v287 = vunpack.c.l.b16 %v147
    %v288 = vunpack.c.h.b16 %v147
    %v289 = vunpack.c.l.b16 %v148
    %v290 = vunpack.c.l.b16 %v149
    %v291 = vunpack.c.h.b16 %v149
    %v292 = vunpack.c.l.b16 %v150
    %v293 = vunpack.c.h.b16 %v150
    %v294 = vunpack.c.l.b16 %v151
    %v295 = vunpack.c.l.b16 %v152
    %v296 = vunpack.c.h.b16 %v152
    %v297 = vunpack.c.l.b16 %v153
    %v298 = vunpack.c.h.b16 %v153
    %v299 = vunpack.c.l.b16 %v154
    %v300 = vunpack.c.l.b16 %v155
    %v301 = vunpack.c.h.b16 %v155
    %v302 = vunpack.c.l.b16 %v156
    %v303 = vunpack.c.h.b16 %v156
    %v304 = vunpack.c.l.b16 %v157
    %v305 = vpack.c.b16 %v235, %v230
    %v306 = vpack.c.b16 %v236, %v231
    %v307 = vpack.c.b16 %v237, %v232
    %v308 = vpack.c.b16 %v238, %v233
    %v309 = vpack.c.b16 %v239, %v234
    %v310 = vpack.c.b16 %v245, %v240
    %v311 = vpack.c.b16 %v246, %v241
    %v312 = vpack.c.b16 %v247, %v242
    %v313 = vpack.c.b16 %v248, %v243
    %v314 = vpack.c.b16 %v249, %v244
    %v315 = vpack.c.b16 %v255, %v250
    %v316 = vpack.c.b16 %v256, %v251
    %v317 = vpack.c.b16 %v257, %v252
    %v318 = vpack.c.b16 %v258, %v253
    %v319 = vpack.c.b16 %v259, %v254
    %v320 = vpack.c.b16 %v265, %v260
    %v321 = vpack.c.b16 %v266, %v261
    %v322 = vpack.c.b16 %v267, %v262
    %v323 = vpack.c.b16 %v268, %v263
    %v324 = vpack.c.b16 %v269, %v264
    %v325 = vpack.c.b16 %v275, %v270
    %v326 = vpack.c.b16 %v276, %v271
    %v327 = vpack.c.b16 %v277, %v272
    %v328 = vpack.c.b16 %v278, %v273
    %v329 = vpack.c.b16 %v279, %v274
    %v330 = vpack.c.b16 %v285, %v280
    %v331 = vpack.c.b16 %v286, %v281
    %v332 = vpack.c.b16 %v287, %v282
    %v333 = vpack.c.b16 %v288, %v283
    %v334 = vpack.c.b16 %v289, %v284
    %v335 = vpack.c.b16 %v295, %v290
    %v336 = vpack.c.b16 %v296, %v291
    %v337 = vpack.c.b16 %v297, %v292
    %v338 = vpack.c.b16 %v298, %v293
    %v339 = vpack.c.b16 %v299, %v294
    %v340 = vpack.c.b16 %v300, %v300
    %v341 = vpack.c.b16 %v301, %v301
    %v342 = vpack.c.b16 %v302, %v302
    %v343 = vpack.c.b16 %v303, %v303
    %v344 = vpack.c.b16 %v304, %v304
    %vm380 = vcmask 982016
    %v382 = vsel %vm380, %v110, 0
    %vm384 = vcmask 1043456
    %v386 = vsel %vm384, %v340, 0
    %v389 = vsel %vm384, %v341, 0
    %v392 = vsel %vm384, %v342, 0
    %v395 = vsel %vm384, %v343, 0
    %v398 = vsel %vm384, %v344, 0
    %400 = vmatprep.subr.bf16.mxu0 %v306
    %401 = vmatpush1.bf16.msra.mxu0 %v305
    %402 = vmatprep.subr.bf16.mxu0 %v311
    %403 = vmatpush1.bf16.msra.mxu0 %v310
    %404 = vmatprep.subr.bf16.mxu0 %v316
    %405 = vmatpush1.bf16.msra.mxu0 %v315
    %406 = vmatprep.subr.bf16.mxu0 %v321
    %407 = vmatpush1.bf16.msra.mxu0 %v320
    %408 = vmatprep.subr.bf16.mxu0 %v326
    %409 = vmatpush1.bf16.msra.mxu0 %v325
    %410 = vmatprep.subr.bf16.mxu0 %v331
    %411 = vmatpush1.bf16.msra.mxu0 %v330
    %412 = vmatprep.subr.bf16.mxu0 %v336
    %413 = vmatpush1.bf16.msra.mxu0 %v335
    %414 = vmatprep.subr.bf16.mxu0 %v389
    %415 = vmatpush1.bf16.msra.mxu0 %v386
    %416 = vmatprep.subr.bf16.mxu0 0
    %417 = vmatpush1.bf16.msra.mxu0 0
    %418 = vmatprep.subr.bf16.mxu0 0
    %419 = vmatpush1.bf16.msra.mxu0 0
    %420 = vmatprep.subr.bf16.mxu0 0
    %421 = vmatpush1.bf16.msra.mxu0 0
    %422 = vmatprep.subr.bf16.mxu0 0
    %423 = vmatpush1.bf16.msra.mxu0 0
    %424 = vmatprep.subr.bf16.mxu0 0
    %425 = vmatpush1.bf16.msra.mxu0 0
    %426 = vmatprep.subr.bf16.mxu0 0
    %427 = vmatpush1.bf16.msra.mxu0 0
    %428 = vmatprep.subr.bf16.mxu0 0
    %429 = vmatpush1.bf16.msra.mxu0 0
    %430 = vmatprep.subr.bf16.mxu0 0
    %431 = vmatpush1.bf16.msra.mxu0 0
    %432 = vmatprep.mubr.bf16.mxu0 0
    %433 = vmatmul.mubr.bf16.gmra.mrb[0].mxu0 %v382
    %v434 = vpop.f32.mrb[0].mxu0
    %v435 = vadd.f32 %v163, %v434
    %v436 = vpop.f32.mrb[0].mxu0
    %v437 = vadd.f32 %v167, %v436
    %v438 = vpop.f32.mrb[0].mxu0
    %v439 = vpop.f32.mrb[0].mxu0
    %440 = vdwg.mxu0
    %441 = vmatprep.subr.bf16.mxu0 %v308
    %442 = vmatpush1.bf16.msra.mxu0 %v307
    %443 = vmatprep.subr.bf16.mxu0 %v313
    %444 = vmatpush1.bf16.msra.mxu0 %v312
    %445 = vmatprep.subr.bf16.mxu0 %v318
    %446 = vmatpush1.bf16.msra.mxu0 %v317
    %447 = vmatprep.subr.bf16.mxu0 %v323
    %448 = vmatpush1.bf16.msra.mxu0 %v322
    %449 = vmatprep.subr.bf16.mxu0 %v328
    %450 = vmatpush1.bf16.msra.mxu0 %v327
    %451 = vmatprep.subr.bf16.mxu0 %v333
    %452 = vmatpush1.bf16.msra.mxu0 %v332
    %453 = vmatprep.subr.bf16.mxu0 %v338
    %454 = vmatpush1.bf16.msra.mxu0 %v337
    %455 = vmatprep.subr.bf16.mxu0 %v395
    %456 = vmatpush1.bf16.msra.mxu0 %v392
    %457 = vmatprep.subr.bf16.mxu0 0
    %458 = vmatpush1.bf16.msra.mxu0 0
    %459 = vmatprep.subr.bf16.mxu0 0
    %460 = vmatpush1.bf16.msra.mxu0 0
    %461 = vmatprep.subr.bf16.mxu0 0
    %462 = vmatpush1.bf16.msra.mxu0 0
    %463 = vmatprep.subr.bf16.mxu0 0
    %464 = vmatpush1.bf16.msra.mxu0 0
    %465 = vmatprep.subr.bf16.mxu0 0
    %466 = vmatpush1.bf16.msra.mxu0 0
    %467 = vmatprep.subr.bf16.mxu0 0
    %468 = vmatpush1.bf16.msra.mxu0 0
    %469 = vmatprep.subr.bf16.mxu0 0
    %470 = vmatpush1.bf16.msra.mxu0 0
    %471 = vmatprep.subr.bf16.mxu0 0
    %472 = vmatpush1.bf16.msra.mxu0 0
    %473 = vmatprep.mubr.bf16.mxu0 0
    %474 = vmatmul.mubr.bf16.gmra.mrb[0].mxu0 %v382
    %v475 = vpop.f32.mrb[0].mxu0
    %v476 = vadd.f32 %v171, %v475
    %v477 = vpop.f32.mrb[0].mxu0
    %v478 = vadd.f32 %v175, %v477
    %v479 = vpop.f32.mrb[0].mxu0
    %v480 = vpop.f32.mrb[0].mxu0
    %481 = vdwg.mxu0
    %482 = vmatprep.subr.bf16.mxu0 0
    %483 = vmatpush1.bf16.msra.mxu0 %v309
    %484 = vmatprep.subr.bf16.mxu0 0
    %485 = vmatpush1.bf16.msra.mxu0 %v314
    %486 = vmatprep.subr.bf16.mxu0 0
    %487 = vmatpush1.bf16.msra.mxu0 %v319
    %488 = vmatprep.subr.bf16.mxu0 0
    %489 = vmatpush1.bf16.msra.mxu0 %v324
    %490 = vmatprep.subr.bf16.mxu0 0
    %491 = vmatpush1.bf16.msra.mxu0 %v329
    %492 = vmatprep.subr.bf16.mxu0 0
    %493 = vmatpush1.bf16.msra.mxu0 %v334
    %494 = vmatprep.subr.bf16.mxu0 0
    %495 = vmatpush1.bf16.msra.mxu0 %v339
    %496 = vmatprep.subr.bf16.mxu0 0
    %497 = vmatpush1.bf16.msra.mxu0 %v398
    %498 = vmatprep.subr.bf16.mxu0 0
    %499 = vmatpush1.bf16.msra.mxu0 0
    %500 = vmatprep.subr.bf16.mxu0 0
    %501 = vmatpush1.bf16.msra.mxu0 0
    %502 = vmatprep.subr.bf16.mxu0 0
    %503 = vmatpush1.bf16.msra.mxu0 0
    %504 = vmatprep.subr.bf16.mxu0 0
    %505 = vmatpush1.bf16.msra.mxu0 0
    %506 = vmatprep.subr.bf16.mxu0 0
    %507 = vmatpush1.bf16.msra.mxu0 0
    %508 = vmatprep.subr.bf16.mxu0 0
    %509 = vmatpush1.bf16.msra.mxu0 0
    %510 = vmatprep.subr.bf16.mxu0 0
    %511 = vmatpush1.bf16.msra.mxu0 0
    %512 = vmatprep.subr.bf16.mxu0 0
    %513 = vmatpush1.bf16.msra.mxu0 0
    %514 = vmatprep.mubr.bf16.mxu0 0
    %515 = vmatmul.mubr.bf16.gmra.mrb[0].mxu0 %v382
    %v516 = vpop.f32.mrb[0].mxu0
    %v517 = vadd.f32 %v179, %v516
    %v518 = vpop.f32.mrb[0].mxu0
    %v519 = vpop.f32.mrb[0].mxu0
    %v520 = vpop.f32.mrb[0].mxu0
    %521 = vdwg.mxu0
    %v522 = vld [vmem:[#allocation4] sm:$0xf]
    %v523 = vld [vmem:[#allocation4 + $0x4] sm:$0xf]
    %v524 = vld [vmem:[#allocation4 + $0x8] sm:$0xf]
    %v525 = vld [vmem:[#allocation4 + $0xc] sm:$0xf]
    %v526 = vld [vmem:[#allocation4 + $0x10] sm:$0xf]
    %v527 = vld [vmem:[#allocation4 + $0x14] sm:$0xf]
    %v528 = vld [vmem:[#allocation4 + $0x18] sm:$0xf]
    %v529 = vld [vmem:[#allocation4 + $0x1c] sm:$0xf]
    %v530 = vld [vmem:[#allocation4 + $0x20] sm:$0xf]
    %v531 = vld [vmem:[#allocation4 + $0x24] sm:$0xf]
    %v532 = vld [vmem:[#allocation4 + $0x28] sm:$0xf]
    %v533 = vld [vmem:[#allocation4 + $0x2c] sm:$0xf]
    %v534 = vld [vmem:[#allocation4 + $0x30] sm:$0xf]
    %v535 = vld [vmem:[#allocation4 + $0x34] sm:$0xf]
    %v536 = vld [vmem:[#allocation4 + $0x38] sm:$0xf]
    %v537 = vld [vmem:[#allocation4 + $0x3c] sm:$0xf]
    %v538 = vld [vmem:[#allocation4 + $0x40] sm:$0xf]
    %v539 = vld [vmem:[#allocation4 + $0x44] sm:$0xf]
    %v540 = vld [vmem:[#allocation4 + $0x48] sm:$0xf]
    %v541 = vld [vmem:[#allocation4 + $0x4c] sm:$0xf]
    %v542 = vld [vmem:[#allocation4 + $0x50] sm:$0xf]
    %v543 = vld [vmem:[#allocation4 + $0x54] sm:$0xf]
    %v544 = vld [vmem:[#allocation4 + $0x58] sm:$0xf]
    %v545 = vld [vmem:[#allocation4 + $0x5c] sm:$0xf]
    %v546 = vld [vmem:[#allocation4 + $0x60] sm:$0xf]
    %v547 = vld [vmem:[#allocation4 + $0x64] sm:$0xf]
    %v548 = vld [vmem:[#allocation4 + $0x68] sm:$0xf]
    %v549 = vld [vmem:[#allocation4 + $0x6c] sm:$0xf]
    %v550 = vld [vmem:[#allocation4 + $0x70] sm:$0xf]
    %v551 = vld [vmem:[#allocation4 + $0x74] sm:$0xf]
    %v552 = vld [vmem:[#allocation4 + $0x78] sm:$0xf]
    %v553 = vld [vmem:[#allocation4 + $0x7c] sm:$0xf]
    %v554 = vld [vmem:[#allocation4 + $0x80] sm:$0xf]
    %v555 = vld [vmem:[#allocation4 + $0x84] sm:$0xf]
    %v556 = vld [vmem:[#allocation4 + $0x88] sm:$0xf]
    %v557 = vld [vmem:[#allocation4 + $0x8c] sm:$0xf]
    %v558 = vld [vmem:[#allocation4 + $0x90] sm:$0xf]
    %v559 = vld [vmem:[#allocation4 + $0x94] sm:$0xf]
    %v560 = vld [vmem:[#allocation4 + $0x98] sm:$0xf]
    %v561 = vld [vmem:[#allocation4 + $0x9c] sm:$0xf]
    %v562 = vld [vmem:[#allocation4 + $0xa0] sm:$0xf]
    %v563 = vld [vmem:[#allocation4 + $0xa4] sm:$0xf]
    %v564 = vld [vmem:[#allocation4 + $0xa8] sm:$0xf]
    %v565 = vld [vmem:[#allocation4 + $0xac] sm:$0xf]
    %v566 = vld [vmem:[#allocation4 + $0xb0] sm:$0xf]
    %v567 = vld [vmem:[#allocation4 + $0xb4] sm:$0xf]
    %v568 = vld [vmem:[#allocation4 + $0xb8] sm:$0xf]
    %v569 = vld [vmem:[#allocation4 + $0xbc] sm:$0xf]
    %v570 = vld [vmem:[#allocation4 + $0xc0] sm:$0xf]
    %v571 = vld [vmem:[#allocation4 + $0xc4] sm:$0xf]
    %v572 = vld [vmem:[#allocation4 + $0xc8] sm:$0xf]
    %v573 = vld [vmem:[#allocation4 + $0xcc] sm:$0xf]
    %v574 = vld [vmem:[#allocation4 + $0xd0] sm:$0xf]
    %v575 = vld [vmem:[#allocation4 + $0xd4] sm:$0xf]
    %v576 = vld [vmem:[#allocation4 + $0xd8] sm:$0xf]
    %v577 = vld [vmem:[#allocation4 + $0xdc] sm:$0xf]
    %v578 = vld [vmem:[#allocation4 + $0xe0] sm:$0xf]
    %v579 = vld [vmem:[#allocation4 + $0xe4] sm:$0xf]
    %v580 = vld [vmem:[#allocation4 + $0xe8] sm:$0xf]
    %v581 = vld [vmem:[#allocation4 + $0xec] sm:$0xf]
    %v584 = vunpack.c.l.b16 %v111
    %v585 = vunpack.c.h.b16 %v111
    %v586 = vunpack.c.l.b16 %v112
    %v587 = vunpack.c.h.b16 %v112
    %v588 = vpack.c.b16 %v584, %v584
    %v589 = vpack.c.b16 %v585, %v585
    %v590 = vpack.c.b16 %v586, %v586
    %v591 = vpack.c.b16 %v587, %v587
    %v655 = vunpack.c.l.b16 %v522
    %v656 = vunpack.c.l.b16 %v523
    %v657 = vunpack.c.l.b16 %v524
    %v658 = vunpack.c.l.b16 %v525
    %v659 = vunpack.c.l.b16 %v526
    %v660 = vunpack.c.l.b16 %v527
    %v661 = vunpack.c.l.b16 %v528
    %v662 = vunpack.c.l.b16 %v529
    %v663 = vunpack.c.l.b16 %v530
    %v664 = vunpack.c.l.b16 %v531
    %v665 = vunpack.c.l.b16 %v532
    %v666 = vunpack.c.l.b16 %v533
    %v667 = vunpack.c.l.b16 %v534
    %v668 = vunpack.c.l.b16 %v535
    %v669 = vunpack.c.l.b16 %v536
    %v670 = vunpack.c.l.b16 %v537
    %v671 = vunpack.c.l.b16 %v538
    %v672 = vunpack.c.l.b16 %v539
    %v673 = vunpack.c.l.b16 %v540
    %v674 = vunpack.c.l.b16 %v541
    %v675 = vunpack.c.l.b16 %v542
    %v676 = vunpack.c.l.b16 %v543
    %v677 = vunpack.c.l.b16 %v544
    %v678 = vunpack.c.l.b16 %v545
    %v679 = vunpack.c.l.b16 %v546
    %v680 = vunpack.c.l.b16 %v547
    %v681 = vunpack.c.l.b16 %v548
    %v682 = vunpack.c.l.b16 %v549
    %v683 = vunpack.c.l.b16 %v550
    %v684 = vunpack.c.l.b16 %v551
    %v685 = vunpack.c.l.b16 %v552
    %v686 = vunpack.c.l.b16 %v553
    %v687 = vunpack.c.l.b16 %v554
    %v688 = vunpack.c.l.b16 %v555
    %v689 = vunpack.c.l.b16 %v556
    %v690 = vunpack.c.l.b16 %v557
    %v691 = vunpack.c.l.b16 %v558
    %v692 = vunpack.c.l.b16 %v559
    %v693 = vunpack.c.l.b16 %v560
    %v694 = vunpack.c.l.b16 %v561
    %v695 = vunpack.c.l.b16 %v562
    %v696 = vunpack.c.l.b16 %v563
    %v697 = vunpack.c.l.b16 %v564
    %v698 = vunpack.c.l.b16 %v565
    %v699 = vunpack.c.l.b16 %v566
    %v700 = vunpack.c.l.b16 %v567
    %v701 = vunpack.c.l.b16 %v568
    %v702 = vunpack.c.l.b16 %v569
    %v703 = vunpack.c.l.b16 %v570
    %v704 = vunpack.c.l.b16 %v571
    %v705 = vunpack.c.l.b16 %v572
    %v706 = vunpack.c.l.b16 %v573
    %v707 = vunpack.c.l.b16 %v574
    %v708 = vunpack.c.l.b16 %v575
    %v709 = vunpack.c.l.b16 %v576
    %v710 = vunpack.c.l.b16 %v577
    %v711 = vunpack.c.l.b16 %v578
    %v712 = vunpack.c.l.b16 %v579
    %v713 = vunpack.c.l.b16 %v580
    %v714 = vunpack.c.l.b16 %v581
    %v715 = vpack.c.b16 %v656, %v655
    %v716 = vpack.c.b16 %v658, %v657
    %v717 = vpack.c.b16 %v660, %v659
    %v718 = vpack.c.b16 %v662, %v661
    %v719 = vpack.c.b16 %v664, %v663
    %v720 = vpack.c.b16 %v666, %v665
    %v721 = vpack.c.b16 %v668, %v667
    %v722 = vpack.c.b16 %v670, %v669
    %v723 = vpack.c.b16 %v672, %v671
    %v724 = vpack.c.b16 %v674, %v673
    %v725 = vpack.c.b16 %v676, %v675
    %v726 = vpack.c.b16 %v678, %v677
    %v727 = vpack.c.b16 %v680, %v679
    %v728 = vpack.c.b16 %v682, %v681
    %v729 = vpack.c.b16 %v684, %v683
    %v730 = vpack.c.b16 %v686, %v685
    %v731 = vpack.c.b16 %v688, %v687
    %v732 = vpack.c.b16 %v690, %v689
    %v733 = vpack.c.b16 %v692, %v691
    %v734 = vpack.c.b16 %v694, %v693
    %v735 = vpack.c.b16 %v696, %v695
    %v736 = vpack.c.b16 %v698, %v697
    %v737 = vpack.c.b16 %v700, %v699
    %v738 = vpack.c.b16 %v702, %v701
    %v739 = vpack.c.b16 %v704, %v703
    %v740 = vpack.c.b16 %v706, %v705
    %v741 = vpack.c.b16 %v708, %v707
    %v742 = vpack.c.b16 %v710, %v709
    %v743 = vpack.c.b16 %v712, %v711
    %v744 = vpack.c.b16 %v714, %v713
    %vm775 = vcmask 785408
    %v777 = vsel %vm775, %v591, 0
    %779 = vmatprep.subr.bf16.mxu0 0
    %780 = vmatpush1.bf16.msra.mxu0 %v715
    %781 = vmatprep.subr.bf16.mxu0 0
    %782 = vmatpush1.bf16.msra.mxu0 %v716
    %783 = vmatprep.subr.bf16.mxu0 0
    %784 = vmatpush1.bf16.msra.mxu0 %v717
    %785 = vmatprep.subr.bf16.mxu0 0
    %786 = vmatpush1.bf16.msra.mxu0 %v718
    %787 = vmatprep.subr.bf16.mxu0 0
    %788 = vmatpush1.bf16.msra.mxu0 %v719
    %789 = vmatprep.subr.bf16.mxu0 0
    %790 = vmatpush1.bf16.msra.mxu0 %v720
    %791 = vmatprep.subr.bf16.mxu0 0
    %792 = vmatpush1.bf16.msra.mxu0 %v721
    %793 = vmatprep.subr.bf16.mxu0 0
    %794 = vmatpush1.bf16.msra.mxu0 %v722
    %795 = vmatprep.subr.bf16.mxu0 0
    %796 = vmatpush1.bf16.msra.mxu0 %v723
    %797 = vmatprep.subr.bf16.mxu0 0
    %798 = vmatpush1.bf16.msra.mxu0 %v724
    %799 = vmatprep.subr.bf16.mxu0 0
    %800 = vmatpush1.bf16.msra.mxu0 %v725
    %801 = vmatprep.subr.bf16.mxu0 0
    %802 = vmatpush1.bf16.msra.mxu0 %v726
    %803 = vmatprep.subr.bf16.mxu0 0
    %804 = vmatpush1.bf16.msra.mxu0 %v727
    %805 = vmatprep.subr.bf16.mxu0 0
    %806 = vmatpush1.bf16.msra.mxu0 %v728
    %807 = vmatprep.subr.bf16.mxu0 0
    %808 = vmatpush1.bf16.msra.mxu0 %v729
    %809 = vmatprep.subr.bf16.mxu0 0
    %810 = vmatpush1.bf16.msra.mxu0 %v730
    %811 = vmatprep.mubr.bf16.mxu0 %v589
    %812 = vmatmul.mubr.bf16.gmra.mrb[0].mxu0 %v588
    %v813 = vpop.f32.mrb[0].mxu0
    %v814 = vadd.f32 0.0, %v813
    %v815 = vpop.f32.mrb[0].mxu0
    %v816 = vpop.f32.mrb[0].mxu0
    %v817 = vpop.f32.mrb[0].mxu0
    %818 = vdwg.mxu0
    %819 = vmatprep.subr.bf16.mxu0 0
    %820 = vmatpush1.bf16.msra.mxu0 %v731
    %821 = vmatprep.subr.bf16.mxu0 0
    %822 = vmatpush1.bf16.msra.mxu0 %v732
    %823 = vmatprep.subr.bf16.mxu0 0
    %824 = vmatpush1.bf16.msra.mxu0 %v733
    %825 = vmatprep.subr.bf16.mxu0 0
    %826 = vmatpush1.bf16.msra.mxu0 %v734
    %827 = vmatprep.subr.bf16.mxu0 0
    %828 = vmatpush1.bf16.msra.mxu0 %v735
    %829 = vmatprep.subr.bf16.mxu0 0
    %830 = vmatpush1.bf16.msra.mxu0 %v736
    %831 = vmatprep.subr.bf16.mxu0 0
    %832 = vmatpush1.bf16.msra.mxu0 %v737
    %833 = vmatprep.subr.bf16.mxu0 0
    %834 = vmatpush1.bf16.msra.mxu0 %v738
    %835 = vmatprep.subr.bf16.mxu0 0
    %836 = vmatpush1.bf16.msra.mxu0 %v739
    %837 = vmatprep.subr.bf16.mxu0 0
    %838 = vmatpush1.bf16.msra.mxu0 %v740
    %839 = vmatprep.subr.bf16.mxu0 0
    %840 = vmatpush1.bf16.msra.mxu0 %v741
    %841 = vmatprep.subr.bf16.mxu0 0
    %842 = vmatpush1.bf16.msra.mxu0 %v742
    %843 = vmatprep.subr.bf16.mxu0 0
    %844 = vmatpush1.bf16.msra.mxu0 %v743
    %845 = vmatprep.subr.bf16.mxu0 0
    %846 = vmatpush1.bf16.msra.mxu0 %v744
    %847 = vmatprep.subr.bf16.mxu0 0
    %848 = vmatpush1.bf16.msra.mxu0 0
    %849 = vmatprep.subr.bf16.mxu0 0
    %850 = vmatpush1.bf16.msra.mxu0 0
    %851 = vmatprep.mubr.bf16.mxu0 %v777
    %852 = vmatmul.mubr.bf16.gmra.mrb[0].mxu0 %v590
    %v853 = vpop.f32.mrb[0].mxu0
    %v854 = vadd.f32 %v814, %v853
    %v855 = vpop.f32.mrb[0].mxu0
    %v856 = vpop.f32.mrb[0].mxu0
    %v857 = vpop.f32.mrb[0].mxu0
    %858 = vdwg.mxu0
    %v859 = vadd.f32 %v517, %v854
    %v860 = vtanh.pop %v435
    %v861 = vtanh.pop %v437
    %v862 = vpack.c.bf16 %v860, %v860
    %v863 = vpack.c.bf16 %v861, %v861
    %v864 = vtanh.pop %v476
    %v865 = vtanh.pop %v478
    %v866 = vpack.c.bf16 %v864, %v864
    %v867 = vpack.c.bf16 %v865, %v865
    %v868 = vtanh.pop %v859
    %v869 = vpack.c.bf16 %v868, %v868
    %v870 = vld [vmem:[#allocation6] sm:$0xff]
    %v871 = vld [vmem:[#allocation6 + $0x8] sm:$0xff]
    %v872 = vld [vmem:[#allocation6 + $0x10] sm:$0xff]
    %v873 = vld [vmem:[#allocation6 + $0x18] sm:$0xff]
    %v874 = vld [vmem:[#allocation6 + $0x20] sm:$0xff]
    %v875 = vld [vmem:[#allocation6 + $0x28] sm:$0xff]
    %v876 = vld [vmem:[#allocation6 + $0x30] sm:$0xff]
    %v877 = vld [vmem:[#allocation6 + $0x38] sm:$0xff]
    %v878 = vld [vmem:[#allocation6 + $0x40] sm:$0xff]
    %v879 = vld [vmem:[#allocation6 + $0x48] sm:$0xff]
    %v880 = vld [vmem:[#allocation6 + $0x50] sm:$0xff]
    %v881 = vld [vmem:[#allocation6 + $0x58] sm:$0xff]
    %v882 = vld [vmem:[#allocation6 + $0x60] sm:$0xff]
    %v883 = vld [vmem:[#allocation6 + $0x68] sm:$0xff]
    %v884 = vld [vmem:[#allocation6 + $0x70] sm:$0xff]
    %v885 = vld [vmem:[#allocation6 + $0x78] sm:$0xff]
    %v886 = vld [vmem:[#allocation6 + $0x80] sm:$0xff]
    %v887 = vld [vmem:[#allocation6 + $0x88] sm:$0xff]
    %v888 = vld [vmem:[#allocation6 + $0x90] sm:$0xff]
    %v889 = vld [vmem:[#allocation6 + $0x98] sm:$0xff]
    %v890 = vld [vmem:[#allocation6 + $0xa0] sm:$0xff]
    %v891 = vld [vmem:[#allocation6 + $0xa8] sm:$0xff]
    %v892 = vld [vmem:[#allocation6 + $0xb0] sm:$0xff]
    %v893 = vld [vmem:[#allocation6 + $0xb8] sm:$0xff]
    %v894 = vld [vmem:[#allocation6 + $0xc0] sm:$0xff]
    %v895 = vld [vmem:[#allocation6 + $0xc8] sm:$0xff]
    %v896 = vld [vmem:[#allocation6 + $0xd0] sm:$0xff]
    %v897 = vld [vmem:[#allocation6 + $0xd8] sm:$0xff]
    %v898 = vld [vmem:[#allocation6 + $0xe0] sm:$0xff]
    %v899 = vld [vmem:[#allocation6 + $0xe8] sm:$0xff]
    %v900 = vld [vmem:[#allocation6 + $0xf0] sm:$0xff]
    %v901 = vld [vmem:[#allocation6 + $0xf8] sm:$0xff]
    %v902 = vld [vmem:[%s7] sm:$0x3]
    %v904 = vlaneseq
    %v905 = vshrl.u32 %v904, 7
    %v906 = vsub.s32 0, %v905
    %v907 = vrot.slane %v902, %v906
    %v908 = vlaneseq
    %v909 = vshrl.u32 %v908, 7
    %v910 = vsub.s32 1, %v909
    %v911 = vrot.slane %v902, %v910
    %v946 = vunpack.c.l.b16 %v870
    %v947 = vunpack.c.h.b16 %v870
    %v948 = vunpack.c.l.b16 %v871
    %v949 = vunpack.c.h.b16 %v871
    %v950 = vunpack.c.l.b16 %v872
    %v951 = vunpack.c.h.b16 %v872
    %v952 = vunpack.c.l.b16 %v873
    %v953 = vunpack.c.h.b16 %v873
    %v954 = vunpack.c.l.b16 %v874
    %v955 = vunpack.c.h.b16 %v874
    %v956 = vunpack.c.l.b16 %v875
    %v957 = vunpack.c.h.b16 %v875
    %v958 = vunpack.c.l.b16 %v876
    %v959 = vunpack.c.h.b16 %v876
    %v960 = vunpack.c.l.b16 %v877
    %v961 = vunpack.c.h.b16 %v877
    %v962 = vunpack.c.l.b16 %v878
    %v963 = vunpack.c.h.b16 %v878
    %v964 = vunpack.c.l.b16 %v879
    %v965 = vunpack.c.h.b16 %v879
    %v966 = vunpack.c.l.b16 %v880
    %v967 = vunpack.c.h.b16 %v880
    %v968 = vunpack.c.l.b16 %v881
    %v969 = vunpack.c.h.b16 %v881
    %v970 = vunpack.c.l.b16 %v882
    %v971 = vunpack.c.h.b16 %v882
    %v972 = vunpack.c.l.b16 %v883
    %v973 = vunpack.c.h.b16 %v883
    %v974 = vunpack.c.l.b16 %v884
    %v975 = vunpack.c.h.b16 %v884
    %v976 = vunpack.c.l.b16 %v885
    %v977 = vunpack.c.h.b16 %v885
    %v978 = vunpack.c.l.b16 %v886
    %v979 = vunpack.c.h.b16 %v886
    %v980 = vunpack.c.l.b16 %v887
    %v981 = vunpack.c.h.b16 %v887
    %v982 = vunpack.c.l.b16 %v888
    %v983 = vunpack.c.h.b16 %v888
    %v984 = vunpack.c.l.b16 %v889
    %v985 = vunpack.c.h.b16 %v889
    %v986 = vunpack.c.l.b16 %v890
    %v987 = vunpack.c.h.b16 %v890
    %v988 = vunpack.c.l.b16 %v891
    %v989 = vunpack.c.h.b16 %v891
    %v990 = vunpack.c.l.b16 %v892
    %v991 = vunpack.c.h.b16 %v892
    %v992 = vunpack.c.l.b16 %v893
    %v993 = vunpack.c.h.b16 %v893
    %v994 = vunpack.c.l.b16 %v894
    %v995 = vunpack.c.h.b16 %v894
    %v996 = vunpack.c.l.b16 %v895
    %v997 = vunpack.c.h.b16 %v895
    %v998 = vunpack.c.l.b16 %v896
    %v999 = vunpack.c.h.b16 %v896
    %v1000 = vunpack.c.l.b16 %v897
    %v1001 = vunpack.c.h.b16 %v897
    %v1002 = vunpack.c.l.b16 %v898
    %v1003 = vunpack.c.h.b16 %v898
    %v1004 = vunpack.c.l.b16 %v899
    %v1005 = vunpack.c.h.b16 %v899
    %v1006 = vunpack.c.l.b16 %v900
    %v1007 = vunpack.c.h.b16 %v900
    %v1008 = vunpack.c.l.b16 %v901
    %v1009 = vunpack.c.h.b16 %v901
    %v1010 = vpack.c.b16 %v948, %v946
    %v1011 = vpack.c.b16 %v949, %v947
    %v1012 = vpack.c.b16 %v952, %v950
    %v1013 = vpack.c.b16 %v953, %v951
    %v1014 = vpack.c.b16 %v956, %v954
    %v1015 = vpack.c.b16 %v957, %v955
    %v1016 = vpack.c.b16 %v960, %v958
    %v1017 = vpack.c.b16 %v961, %v959
    %v1018 = vpack.c.b16 %v964, %v962
    %v1019 = vpack.c.b16 %v965, %v963
    %v1020 = vpack.c.b16 %v968, %v966
    %v1021 = vpack.c.b16 %v969, %v967
    %v1022 = vpack.c.b16 %v972, %v970
    %v1023 = vpack.c.b16 %v973, %v971
    %v1024 = vpack.c.b16 %v976, %v974
    %v1025 = vpack.c.b16 %v977, %v975
    %v1026 = vpack.c.b16 %v980, %v978
    %v1027 = vpack.c.b16 %v981, %v979
    %v1028 = vpack.c.b16 %v984, %v982
    %v1029 = vpack.c.b16 %v985, %v983
    %v1030 = vpack.c.b16 %v988, %v986
    %v1031 = vpack.c.b16 %v989, %v987
    %v1032 = vpack.c.b16 %v992, %v990
    %v1033 = vpack.c.b16 %v993, %v991
    %v1034 = vpack.c.b16 %v996, %v994
    %v1035 = vpack.c.b16 %v997, %v995
    %v1036 = vpack.c.b16 %v1000, %v998
    %v1037 = vpack.c.b16 %v1001, %v999
    %v1038 = vpack.c.b16 %v1004, %v1002
    %v1039 = vpack.c.b16 %v1005, %v1003
    %v1040 = vpack.c.b16 %v1008, %v1006
    %v1041 = vpack.c.b16 %v1009, %v1007
    %1074 = vmatprep.subr.bf16.mxu0 %v1011
    %1075 = vmatpush1.bf16.msra.mxu0 %v1010
    %1076 = vmatprep.subr.bf16.mxu0 %v1013
    %1077 = vmatpush1.bf16.msra.mxu0 %v1012
    %1078 = vmatprep.subr.bf16.mxu0 %v1015
    %1079 = vmatpush1.bf16.msra.mxu0 %v1014
    %1080 = vmatprep.subr.bf16.mxu0 %v1017
    %1081 = vmatpush1.bf16.msra.mxu0 %v1016
    %1082 = vmatprep.subr.bf16.mxu0 %v1019
    %1083 = vmatpush1.bf16.msra.mxu0 %v1018
    %1084 = vmatprep.subr.bf16.mxu0 %v1021
    %1085 = vmatpush1.bf16.msra.mxu0 %v1020
    %1086 = vmatprep.subr.bf16.mxu0 %v1023
    %1087 = vmatpush1.bf16.msra.mxu0 %v1022
    %1088 = vmatprep.subr.bf16.mxu0 %v1025
    %1089 = vmatpush1.bf16.msra.mxu0 %v1024
    %1090 = vmatprep.subr.bf16.mxu0 %v1027
    %1091 = vmatpush1.bf16.msra.mxu0 %v1026
    %1092 = vmatprep.subr.bf16.mxu0 %v1029
    %1093 = vmatpush1.bf16.msra.mxu0 %v1028
    %1094 = vmatprep.subr.bf16.mxu0 %v1031
    %1095 = vmatpush1.bf16.msra.mxu0 %v1030
    %1096 = vmatprep.subr.bf16.mxu0 %v1033
    %1097 = vmatpush1.bf16.msra.mxu0 %v1032
    %1098 = vmatprep.subr.bf16.mxu0 %v1035
    %1099 = vmatpush1.bf16.msra.mxu0 %v1034
    %1100 = vmatprep.subr.bf16.mxu0 %v1037
    %1101 = vmatpush1.bf16.msra.mxu0 %v1036
    %1102 = vmatprep.subr.bf16.mxu0 %v1039
    %1103 = vmatpush1.bf16.msra.mxu0 %v1038
    %1104 = vmatprep.subr.bf16.mxu0 %v1041
    %1105 = vmatpush1.bf16.msra.mxu0 %v1040
    %1106 = vmatprep.mubr.bf16.mxu0 %v863
    %1107 = vmatmul.mubr.bf16.gmra.mrb[0].mxu0 %v862
    %v1108 = vpop.f32.mrb[0].mxu0
    %v1109 = vadd.f32 %v907, %v1108
    %v1110 = vpop.f32.mrb[0].mxu0
    %v1111 = vadd.f32 %v911, %v1110
    %v1112 = vpop.f32.mrb[0].mxu0
    %v1113 = vpop.f32.mrb[0].mxu0
    %1114 = vdwg.mxu0
    %v1115 = vtanh.pop %v1109
    %v1116 = vtanh.pop %v1111
    %v1117 = vpack.c.bf16 %v1115, %v1115
    %v1118 = vpack.c.bf16 %v1116, %v1116
    %v1119 = vld [vmem:[#allocation7] sm:$0xff]
    %v1120 = vld [vmem:[#allocation7 + $0x8] sm:$0xff]
    %v1121 = vld [vmem:[#allocation7 + $0x10] sm:$0xff]
    %v1122 = vld [vmem:[#allocation7 + $0x18] sm:$0xff]
    %v1123 = vld [vmem:[#allocation7 + $0x20] sm:$0xff]
    %v1124 = vld [vmem:[#allocation7 + $0x28] sm:$0xff]
    %v1125 = vld [vmem:[#allocation7 + $0x30] sm:$0xff]
    %v1126 = vld [vmem:[#allocation7 + $0x38] sm:$0xff]
    %v1127 = vld [vmem:[#allocation7 + $0x40] sm:$0xff]
    %v1128 = vld [vmem:[#allocation7 + $0x48] sm:$0xff]
    %v1129 = vld [vmem:[#allocation7 + $0x50] sm:$0xff]
    %v1130 = vld [vmem:[#allocation7 + $0x58] sm:$0xff]
    %v1131 = vld [vmem:[#allocation7 + $0x60] sm:$0xff]
    %v1132 = vld [vmem:[#allocation7 + $0x68] sm:$0xff]
    %v1133 = vld [vmem:[#allocation7 + $0x70] sm:$0xff]
    %v1134 = vld [vmem:[#allocation7 + $0x78] sm:$0xff]
    %v1135 = vld [vmem:[#allocation7 + $0x80] sm:$0xff]
    %v1136 = vld [vmem:[#allocation7 + $0x88] sm:$0xff]
    %v1137 = vld [vmem:[#allocation7 + $0x90] sm:$0xff]
    %v1138 = vld [vmem:[#allocation7 + $0x98] sm:$0xff]
    %v1139 = vld [vmem:[#allocation7 + $0xa0] sm:$0xff]
    %v1140 = vld [vmem:[#allocation7 + $0xa8] sm:$0xff]
    %v1141 = vld [vmem:[#allocation7 + $0xb0] sm:$0xff]
    %v1142 = vld [vmem:[#allocation7 + $0xb8] sm:$0xff]
    %v1143 = vld [vmem:[#allocation7 + $0xc0] sm:$0xff]
    %v1144 = vld [vmem:[#allocation7 + $0xc8] sm:$0xff]
    %v1145 = vld [vmem:[#allocation7 + $0xd0] sm:$0xff]
    %v1146 = vld [vmem:[#allocation7 + $0xd8] sm:$0xff]
    %v1147 = vld [vmem:[#allocation7 + $0xe0] sm:$0xff]
    %v1148 = vld [vmem:[#allocation7 + $0xe8] sm:$0xff]
    %v1149 = vld [vmem:[#allocation7 + $0xf0] sm:$0xff]
    %v1150 = vld [vmem:[#allocation7 + $0xf8] sm:$0xff]
    %v1151 = vld [vmem:[%s9] sm:$0x3]
    %v1153 = vlaneseq
    %v1154 = vshrl.u32 %v1153, 7
    %v1155 = vsub.s32 0, %v1154
    %v1156 = vrot.slane %v1151, %v1155
    %v1157 = vlaneseq
    %v1158 = vshrl.u32 %v1157, 7
    %v1159 = vsub.s32 1, %v1158
    %v1160 = vrot.slane %v1151, %v1159
    %v1195 = vunpack.c.l.b16 %v1119
    %v1196 = vunpack.c.h.b16 %v1119
    %v1197 = vunpack.c.l.b16 %v1120
    %v1198 = vunpack.c.h.b16 %v1120
    %v1199 = vunpack.c.l.b16 %v1121
    %v1200 = vunpack.c.h.b16 %v1121
    %v1201 = vunpack.c.l.b16 %v1122
    %v1202 = vunpack.c.h.b16 %v1122
    %v1203 = vunpack.c.l.b16 %v1123
    %v1204 = vunpack.c.h.b16 %v1123
    %v1205 = vunpack.c.l.b16 %v1124
    %v1206 = vunpack.c.h.b16 %v1124
    %v1207 = vunpack.c.l.b16 %v1125
    %v1208 = vunpack.c.h.b16 %v1125
    %v1209 = vunpack.c.l.b16 %v1126
    %v1210 = vunpack.c.h.b16 %v1126
    %v1211 = vunpack.c.l.b16 %v1127
    %v1212 = vunpack.c.h.b16 %v1127
    %v1213 = vunpack.c.l.b16 %v1128
    %v1214 = vunpack.c.h.b16 %v1128
    %v1215 = vunpack.c.l.b16 %v1129
    %v1216 = vunpack.c.h.b16 %v1129
    %v1217 = vunpack.c.l.b16 %v1130
    %v1218 = vunpack.c.h.b16 %v1130
    %v1219 = vunpack.c.l.b16 %v1131
    %v1220 = vunpack.c.h.b16 %v1131
    %v1221 = vunpack.c.l.b16 %v1132
    %v1222 = vunpack.c.h.b16 %v1132
    %v1223 = vunpack.c.l.b16 %v1133
    %v1224 = vunpack.c.h.b16 %v1133
    %v1225 = vunpack.c.l.b16 %v1134
    %v1226 = vunpack.c.h.b16 %v1134
    %v1227 = vunpack.c.l.b16 %v1135
    %v1228 = vunpack.c.h.b16 %v1135
    %v1229 = vunpack.c.l.b16 %v1136
    %v1230 = vunpack.c.h.b16 %v1136
    %v1231 = vunpack.c.l.b16 %v1137
    %v1232 = vunpack.c.h.b16 %v1137
    %v1233 = vunpack.c.l.b16 %v1138
    %v1234 = vunpack.c.h.b16 %v1138
    %v1235 = vunpack.c.l.b16 %v1139
    %v1236 = vunpack.c.h.b16 %v1139
    %v1237 = vunpack.c.l.b16 %v1140
    %v1238 = vunpack.c.h.b16 %v1140
    %v1239 = vunpack.c.l.b16 %v1141
    %v1240 = vunpack.c.h.b16 %v1141
    %v1241 = vunpack.c.l.b16 %v1142
    %v1242 = vunpack.c.h.b16 %v1142
    %v1243 = vunpack.c.l.b16 %v1143
    %v1244 = vunpack.c.h.b16 %v1143
    %v1245 = vunpack.c.l.b16 %v1144
    %v1246 = vunpack.c.h.b16 %v1144
    %v1247 = vunpack.c.l.b16 %v1145
    %v1248 = vunpack.c.h.b16 %v1145
    %v1249 = vunpack.c.l.b16 %v1146
    %v1250 = vunpack.c.h.b16 %v1146
    %v1251 = vunpack.c.l.b16 %v1147
    %v1252 = vunpack.c.h.b16 %v1147
    %v1253 = vunpack.c.l.b16 %v1148
    %v1254 = vunpack.c.h.b16 %v1148
    %v1255 = vunpack.c.l.b16 %v1149
    %v1256 = vunpack.c.h.b16 %v1149
    %v1257 = vunpack.c.l.b16 %v1150
    %v1258 = vunpack.c.h.b16 %v1150
    %v1259 = vpack.c.b16 %v1197, %v1195
    %v1260 = vpack.c.b16 %v1198, %v1196
    %v1261 = vpack.c.b16 %v1201, %v1199
    %v1262 = vpack.c.b16 %v1202, %v1200
    %v1263 = vpack.c.b16 %v1205, %v1203
    %v1264 = vpack.c.b16 %v1206, %v1204
    %v1265 = vpack.c.b16 %v1209, %v1207
    %v1266 = vpack.c.b16 %v1210, %v1208
    %v1267 = vpack.c.b16 %v1213, %v1211
    %v1268 = vpack.c.b16 %v1214, %v1212
    %v1269 = vpack.c.b16 %v1217, %v1215
    %v1270 = vpack.c.b16 %v1218, %v1216
    %v1271 = vpack.c.b16 %v1221, %v1219
    %v1272 = vpack.c.b16 %v1222, %v1220
    %v1273 = vpack.c.b16 %v1225, %v1223
    %v1274 = vpack.c.b16 %v1226, %v1224
    %v1275 = vpack.c.b16 %v1229, %v1227
    %v1276 = vpack.c.b16 %v1230, %v1228
    %v1277 = vpack.c.b16 %v1233, %v1231
    %v1278 = vpack.c.b16 %v1234, %v1232
    %v1279 = vpack.c.b16 %v1237, %v1235
    %v1280 = vpack.c.b16 %v1238, %v1236
    %v1281 = vpack.c.b16 %v1241, %v1239
    %v1282 = vpack.c.b16 %v1242, %v1240
    %v1283 = vpack.c.b16 %v1245, %v1243
    %v1284 = vpack.c.b16 %v1246, %v1244
    %v1285 = vpack.c.b16 %v1249, %v1247
    %v1286 = vpack.c.b16 %v1250, %v1248
    %v1287 = vpack.c.b16 %v1253, %v1251
    %v1288 = vpack.c.b16 %v1254, %v1252
    %v1289 = vpack.c.b16 %v1257, %v1255
    %v1290 = vpack.c.b16 %v1258, %v1256
    %1323 = vmatprep.subr.bf16.mxu0 %v1260
    %1324 = vmatpush1.bf16.msra.mxu0 %v1259
    %1325 = vmatprep.subr.bf16.mxu0 %v1262
    %1326 = vmatpush1.bf16.msra.mxu0 %v1261
    %1327 = vmatprep.subr.bf16.mxu0 %v1264
    %1328 = vmatpush1.bf16.msra.mxu0 %v1263
    %1329 = vmatprep.subr.bf16.mxu0 %v1266
    %1330 = vmatpush1.bf16.msra.mxu0 %v1265
    %1331 = vmatprep.subr.bf16.mxu0 %v1268
    %1332 = vmatpush1.bf16.msra.mxu0 %v1267
    %1333 = vmatprep.subr.bf16.mxu0 %v1270
    %1334 = vmatpush1.bf16.msra.mxu0 %v1269
    %1335 = vmatprep.subr.bf16.mxu0 %v1272
    %1336 = vmatpush1.bf16.msra.mxu0 %v1271
    %1337 = vmatprep.subr.bf16.mxu0 %v1274
    %1338 = vmatpush1.bf16.msra.mxu0 %v1273
    %1339 = vmatprep.subr.bf16.mxu0 %v1276
    %1340 = vmatpush1.bf16.msra.mxu0 %v1275
    %1341 = vmatprep.subr.bf16.mxu0 %v1278
    %1342 = vmatpush1.bf16.msra.mxu0 %v1277
    %1343 = vmatprep.subr.bf16.mxu0 %v1280
    %1344 = vmatpush1.bf16.msra.mxu0 %v1279
    %1345 = vmatprep.subr.bf16.mxu0 %v1282
    %1346 = vmatpush1.bf16.msra.mxu0 %v1281
    %1347 = vmatprep.subr.bf16.mxu0 %v1284
    %1348 = vmatpush1.bf16.msra.mxu0 %v1283
    %1349 = vmatprep.subr.bf16.mxu0 %v1286
    %1350 = vmatpush1.bf16.msra.mxu0 %v1285
    %1351 = vmatprep.subr.bf16.mxu0 %v1288
    %1352 = vmatpush1.bf16.msra.mxu0 %v1287
    %1353 = vmatprep.subr.bf16.mxu0 %v1290
    %1354 = vmatpush1.bf16.msra.mxu0 %v1289
    %1355 = vmatprep.mubr.bf16.mxu0 %v867
    %1356 = vmatmul.mubr.bf16.gmra.mrb[0].mxu0 %v866
    %v1357 = vpop.f32.mrb[0].mxu0
    %v1358 = vadd.f32 %v1156, %v1357
    %v1359 = vpop.f32.mrb[0].mxu0
    %v1360 = vadd.f32 %v1160, %v1359
    %v1361 = vpop.f32.mrb[0].mxu0
    %v1362 = vpop.f32.mrb[0].mxu0
    %1363 = vdwg.mxu0
    %v1364 = vtanh.pop %v1358
    %v1365 = vtanh.pop %v1360
    %v1366 = vpack.c.bf16 %v1364, %v1364
    %v1367 = vpack.c.bf16 %v1365, %v1365
    %v1368 = vld [vmem:[#allocation9] sm:$0xf]
    %v1369 = vld [vmem:[#allocation9 + $0x4] sm:$0xf]
    %v1370 = vld [vmem:[#allocation9 + $0x8] sm:$0xf]
    %v1371 = vld [vmem:[#allocation9 + $0xc] sm:$0xf]
    %v1372 = vld [vmem:[#allocation9 + $0x10] sm:$0xf]
    %v1373 = vld [vmem:[#allocation9 + $0x14] sm:$0xf]
    %v1374 = vld [vmem:[#allocation9 + $0x18] sm:$0xf]
    %v1375 = vld [vmem:[#allocation9 + $0x1c] sm:$0xf]
    %v1376 = vld [vmem:[#allocation9 + $0x20] sm:$0xf]
    %v1377 = vld [vmem:[#allocation9 + $0x24] sm:$0xf]
    %v1378 = vld [vmem:[#allocation9 + $0x28] sm:$0xf]
    %v1379 = vld [vmem:[#allocation9 + $0x2c] sm:$0xf]
    %v1380 = vld [vmem:[#allocation9 + $0x30] sm:$0xf]
    %v1381 = vld [vmem:[#allocation9 + $0x34] sm:$0xf]
    %v1382 = vld [vmem:[#allocation9 + $0x38] sm:$0xf]
    %v1383 = vld [vmem:[#allocation9 + $0x3c] sm:$0xf]
    %v1384 = vld [vmem:[#allocation9 + $0x40] sm:$0xf]
    %v1385 = vld [vmem:[#allocation9 + $0x44] sm:$0xf]
    %v1386 = vld [vmem:[#allocation9 + $0x48] sm:$0xf]
    %v1387 = vld [vmem:[#allocation9 + $0x4c] sm:$0xf]
    %v1388 = vld [vmem:[#allocation9 + $0x50] sm:$0xf]
    %v1389 = vld [vmem:[#allocation9 + $0x54] sm:$0xf]
    %v1390 = vld [vmem:[#allocation9 + $0x58] sm:$0xf]
    %v1391 = vld [vmem:[#allocation9 + $0x5c] sm:$0xf]
    %v1392 = vld [vmem:[#allocation9 + $0x60] sm:$0xf]
    %v1393 = vld [vmem:[#allocation9 + $0x64] sm:$0xf]
    %v1394 = vld [vmem:[#allocation9 + $0x68] sm:$0xf]
    %v1395 = vld [vmem:[#allocation9 + $0x6c] sm:$0xf]
    %v1396 = vld [vmem:[#allocation9 + $0x70] sm:$0xf]
    %v1397 = vld [vmem:[#allocation9 + $0x74] sm:$0xf]
    %v1398 = vld [vmem:[#allocation9 + $0x78] sm:$0xf]
    %v1399 = vld [vmem:[#allocation9 + $0x7c] sm:$0xf]
    %v1400 = vld [vmem:[#allocation9 + $0x80] sm:$0xf]
    %v1401 = vld [vmem:[#allocation9 + $0x84] sm:$0xf]
    %v1402 = vld [vmem:[#allocation9 + $0x88] sm:$0xf]
    %v1403 = vld [vmem:[#allocation9 + $0x8c] sm:$0xf]
    %v1404 = vld [vmem:[#allocation9 + $0x90] sm:$0xf]
    %v1405 = vld [vmem:[#allocation9 + $0x94] sm:$0xf]
    %v1406 = vld [vmem:[#allocation9 + $0x98] sm:$0xf]
    %v1407 = vld [vmem:[#allocation9 + $0x9c] sm:$0xf]
    %v1408 = vld [vmem:[#allocation9 + $0xa0] sm:$0xf]
    %v1409 = vld [vmem:[#allocation9 + $0xa4] sm:$0xf]
    %v1410 = vld [vmem:[#allocation9 + $0xa8] sm:$0xf]
    %v1411 = vld [vmem:[#allocation9 + $0xac] sm:$0xf]
    %v1412 = vld [vmem:[#allocation9 + $0xb0] sm:$0xf]
    %v1413 = vld [vmem:[#allocation9 + $0xb4] sm:$0xf]
    %v1414 = vld [vmem:[#allocation9 + $0xb8] sm:$0xf]
    %v1415 = vld [vmem:[#allocation9 + $0xbc] sm:$0xf]
    %v1416 = vld [vmem:[#allocation9 + $0xc0] sm:$0xf]
    %v1417 = vld [vmem:[#allocation9 + $0xc4] sm:$0xf]
    %v1418 = vld [vmem:[#allocation9 + $0xc8] sm:$0xf]
    %v1419 = vld [vmem:[#allocation9 + $0xcc] sm:$0xf]
    %v1420 = vld [vmem:[#allocation9 + $0xd0] sm:$0xf]
    %v1421 = vld [vmem:[#allocation9 + $0xd4] sm:$0xf]
    %v1422 = vld [vmem:[#allocation9 + $0xd8] sm:$0xf]
    %v1423 = vld [vmem:[#allocation9 + $0xdc] sm:$0xf]
    %v1424 = vld [vmem:[#allocation9 + $0xe0] sm:$0xf]
    %v1425 = vld [vmem:[#allocation9 + $0xe4] sm:$0xf]
    %v1426 = vld [vmem:[#allocation9 + $0xe8] sm:$0xf]
    %v1427 = vld [vmem:[#allocation9 + $0xec] sm:$0xf]
    %v1428 = vld [vmem:[#allocation9 + $0xf0] sm:$0xf]
    %v1429 = vld [vmem:[#allocation9 + $0xf4] sm:$0xf]
    %v1430 = vld [vmem:[#allocation9 + $0xf8] sm:$0xf]
    %v1431 = vld [vmem:[#allocation9 + $0xfc] sm:$0xf]
    %v1432 = vld [vmem:[#allocation9 + $0x100] sm:$0xf]
    %v1433 = vld [vmem:[#allocation9 + $0x104] sm:$0xf]
    %v1434 = vld [vmem:[#allocation9 + $0x108] sm:$0xf]
    %v1435 = vld [vmem:[#allocation9 + $0x10c] sm:$0xf]
    %v1436 = vld [vmem:[#allocation9 + $0x110] sm:$0xf]
    %v1437 = vld [vmem:[#allocation9 + $0x114] sm:$0xf]
    %v1438 = vld [vmem:[#allocation9 + $0x118] sm:$0xf]
    %v1439 = vld [vmem:[#allocation9 + $0x11c] sm:$0xf]
    %v1440 = vld [vmem:[#allocation9 + $0x120] sm:$0xf]
    %v1441 = vld [vmem:[#allocation9 + $0x124] sm:$0xf]
    %v1442 = vld [vmem:[#allocation9 + $0x128] sm:$0xf]
    %v1443 = vld [vmem:[#allocation9 + $0x12c] sm:$0xf]
    %v1444 = vld [vmem:[#allocation9 + $0x130] sm:$0xf]
    %v1445 = vld [vmem:[#allocation9 + $0x134] sm:$0xf]
    %v1446 = vld [vmem:[#allocation9 + $0x138] sm:$0xf]
    %v1447 = vld [vmem:[#allocation9 + $0x13c] sm:$0xf]
    %v1448 = vld [vmem:[%s11] sm:$0x1]
    %v1450 = vlaneseq
    %v1451 = vshrl.u32 %v1450, 7
    %v1452 = vsub.s32 0, %v1451
    %v1453 = vrot.slane %v1448, %v1452
    %v1535 = vunpack.c.l.b16 %v1368
    %v1536 = vunpack.c.l.b16 %v1369
    %v1537 = vunpack.c.l.b16 %v1370
    %v1538 = vunpack.c.l.b16 %v1371
    %v1539 = vunpack.c.l.b16 %v1372
    %v1540 = vunpack.c.l.b16 %v1373
    %v1541 = vunpack.c.l.b16 %v1374
    %v1542 = vunpack.c.l.b16 %v1375
    %v1543 = vunpack.c.l.b16 %v1376
    %v1544 = vunpack.c.l.b16 %v1377
    %v1545 = vunpack.c.l.b16 %v1378
    %v1546 = vunpack.c.l.b16 %v1379
    %v1547 = vunpack.c.l.b16 %v1380
    %v1548 = vunpack.c.l.b16 %v1381
    %v1549 = vunpack.c.l.b16 %v1382
    %v1550 = vunpack.c.l.b16 %v1383
    %v1551 = vunpack.c.l.b16 %v1384
    %v1552 = vunpack.c.l.b16 %v1385
    %v1553 = vunpack.c.l.b16 %v1386
    %v1554 = vunpack.c.l.b16 %v1387
    %v1555 = vunpack.c.l.b16 %v1388
    %v1556 = vunpack.c.l.b16 %v1389
    %v1557 = vunpack.c.l.b16 %v1390
    %v1558 = vunpack.c.l.b16 %v1391
    %v1559 = vunpack.c.l.b16 %v1392
    %v1560 = vunpack.c.l.b16 %v1393
    %v1561 = vunpack.c.l.b16 %v1394
    %v1562 = vunpack.c.l.b16 %v1395
    %v1563 = vunpack.c.l.b16 %v1396
    %v1564 = vunpack.c.l.b16 %v1397
    %v1565 = vunpack.c.l.b16 %v1398
    %v1566 = vunpack.c.l.b16 %v1399
    %v1567 = vunpack.c.l.b16 %v1400
    %v1568 = vunpack.c.l.b16 %v1401
    %v1569 = vunpack.c.l.b16 %v1402
    %v1570 = vunpack.c.l.b16 %v1403
    %v1571 = vunpack.c.l.b16 %v1404
    %v1572 = vunpack.c.l.b16 %v1405
    %v1573 = vunpack.c.l.b16 %v1406
    %v1574 = vunpack.c.l.b16 %v1407
    %v1575 = vunpack.c.l.b16 %v1408
    %v1576 = vunpack.c.l.b16 %v1409
    %v1577 = vunpack.c.l.b16 %v1410
    %v1578 = vunpack.c.l.b16 %v1411
    %v1579 = vunpack.c.l.b16 %v1412
    %v1580 = vunpack.c.l.b16 %v1413
    %v1581 = vunpack.c.l.b16 %v1414
    %v1582 = vunpack.c.l.b16 %v1415
    %v1583 = vunpack.c.l.b16 %v1416
    %v1584 = vunpack.c.l.b16 %v1417
    %v1585 = vunpack.c.l.b16 %v1418
    %v1586 = vunpack.c.l.b16 %v1419
    %v1587 = vunpack.c.l.b16 %v1420
    %v1588 = vunpack.c.l.b16 %v1421
    %v1589 = vunpack.c.l.b16 %v1422
    %v1590 = vunpack.c.l.b16 %v1423
    %v1591 = vunpack.c.l.b16 %v1424
    %v1592 = vunpack.c.l.b16 %v1425
    %v1593 = vunpack.c.l.b16 %v1426
    %v1594 = vunpack.c.l.b16 %v1427
    %v1595 = vunpack.c.l.b16 %v1428
    %v1596 = vunpack.c.l.b16 %v1429
    %v1597 = vunpack.c.l.b16 %v1430
    %v1598 = vunpack.c.l.b16 %v1431
    %v1599 = vunpack.c.l.b16 %v1432
    %v1600 = vunpack.c.l.b16 %v1433
    %v1601 = vunpack.c.l.b16 %v1434
    %v1602 = vunpack.c.l.b16 %v1435
    %v1603 = vunpack.c.l.b16 %v1436
    %v1604 = vunpack.c.l.b16 %v1437
    %v1605 = vunpack.c.l.b16 %v1438
    %v1606 = vunpack.c.l.b16 %v1439
    %v1607 = vunpack.c.l.b16 %v1440
    %v1608 = vunpack.c.l.b16 %v1441
    %v1609 = vunpack.c.l.b16 %v1442
    %v1610 = vunpack.c.l.b16 %v1443
    %v1611 = vunpack.c.l.b16 %v1444
    %v1612 = vunpack.c.l.b16 %v1445
    %v1613 = vunpack.c.l.b16 %v1446
    %v1614 = vunpack.c.l.b16 %v1447
    %v1615 = vpack.c.b16 %v1536, %v1535
    %v1616 = vpack.c.b16 %v1538, %v1537
    %v1617 = vpack.c.b16 %v1540, %v1539
    %v1618 = vpack.c.b16 %v1542, %v1541
    %v1619 = vpack.c.b16 %v1544, %v1543
    %v1620 = vpack.c.b16 %v1546, %v1545
    %v1621 = vpack.c.b16 %v1548, %v1547
    %v1622 = vpack.c.b16 %v1550, %v1549
    %v1623 = vpack.c.b16 %v1552, %v1551
    %v1624 = vpack.c.b16 %v1554, %v1553
    %v1625 = vpack.c.b16 %v1556, %v1555
    %v1626 = vpack.c.b16 %v1558, %v1557
    %v1627 = vpack.c.b16 %v1560, %v1559
    %v1628 = vpack.c.b16 %v1562, %v1561
    %v1629 = vpack.c.b16 %v1564, %v1563
    %v1630 = vpack.c.b16 %v1566, %v1565
    %v1631 = vpack.c.b16 %v1568, %v1567
    %v1632 = vpack.c.b16 %v1570, %v1569
    %v1633 = vpack.c.b16 %v1572, %v1571
    %v1634 = vpack.c.b16 %v1574, %v1573
    %v1635 = vpack.c.b16 %v1576, %v1575
    %v1636 = vpack.c.b16 %v1578, %v1577
    %v1637 = vpack.c.b16 %v1580, %v1579
    %v1638 = vpack.c.b16 %v1582, %v1581
    %v1639 = vpack.c.b16 %v1584, %v1583
    %v1640 = vpack.c.b16 %v1586, %v1585
    %v1641 = vpack.c.b16 %v1588, %v1587
    %v1642 = vpack.c.b16 %v1590, %v1589
    %v1643 = vpack.c.b16 %v1592, %v1591
    %v1644 = vpack.c.b16 %v1594, %v1593
    %v1645 = vpack.c.b16 %v1596, %v1595
    %v1646 = vpack.c.b16 %v1598, %v1597
    %v1647 = vpack.c.b16 %v1600, %v1599
    %v1648 = vpack.c.b16 %v1602, %v1601
    %v1649 = vpack.c.b16 %v1604, %v1603
    %v1650 = vpack.c.b16 %v1606, %v1605
    %v1651 = vpack.c.b16 %v1608, %v1607
    %v1652 = vpack.c.b16 %v1610, %v1609
    %v1653 = vpack.c.b16 %v1612, %v1611
    %v1654 = vpack.c.b16 %v1614, %v1613
    %1695 = vmatprep.subr.bf16.mxu0 0
    %1696 = vmatpush1.bf16.msra.mxu0 %v1615
    %1697 = vmatprep.subr.bf16.mxu0 0
    %1698 = vmatpush1.bf16.msra.mxu0 %v1616
    %1699 = vmatprep.subr.bf16.mxu0 0
    %1700 = vmatpush1.bf16.msra.mxu0 %v1617
    %1701 = vmatprep.subr.bf16.mxu0 0
    %1702 = vmatpush1.bf16.msra.mxu0 %v1618
    %1703 = vmatprep.subr.bf16.mxu0 0
    %1704 = vmatpush1.bf16.msra.mxu0 %v1619
    %1705 = vmatprep.subr.bf16.mxu0 0
    %1706 = vmatpush1.bf16.msra.mxu0 %v1620
    %1707 = vmatprep.subr.bf16.mxu0 0
    %1708 = vmatpush1.bf16.msra.mxu0 %v1621
    %1709 = vmatprep.subr.bf16.mxu0 0
    %1710 = vmatpush1.bf16.msra.mxu0 %v1622
    %1711 = vmatprep.subr.bf16.mxu0 0
    %1712 = vmatpush1.bf16.msra.mxu0 %v1623
    %1713 = vmatprep.subr.bf16.mxu0 0
    %1714 = vmatpush1.bf16.msra.mxu0 %v1624
    %1715 = vmatprep.subr.bf16.mxu0 0
    %1716 = vmatpush1.bf16.msra.mxu0 %v1625
    %1717 = vmatprep.subr.bf16.mxu0 0
    %1718 = vmatpush1.bf16.msra.mxu0 %v1626
    %1719 = vmatprep.subr.bf16.mxu0 0
    %1720 = vmatpush1.bf16.msra.mxu0 %v1627
    %1721 = vmatprep.subr.bf16.mxu0 0
    %1722 = vmatpush1.bf16.msra.mxu0 %v1628
    %1723 = vmatprep.subr.bf16.mxu0 0
    %1724 = vmatpush1.bf16.msra.mxu0 %v1629
    %1725 = vmatprep.subr.bf16.mxu0 0
    %1726 = vmatpush1.bf16.msra.mxu0 %v1630
    %1727 = vmatprep.mubr.bf16.mxu0 %v1118
    %1728 = vmatmul.mubr.bf16.gmra.mrb[0].mxu0 %v1117
    %v1729 = vpop.f32.mrb[0].mxu0
    %v1730 = vadd.f32 %v1453, %v1729
    %v1731 = vpop.f32.mrb[0].mxu0
    %v1732 = vpop.f32.mrb[0].mxu0
    %v1733 = vpop.f32.mrb[0].mxu0
    %1734 = vdwg.mxu0
    %1735 = vmatprep.subr.bf16.mxu0 0
    %1736 = vmatpush1.bf16.msra.mxu0 %v1631
    %1737 = vmatprep.subr.bf16.mxu0 0
    %1738 = vmatpush1.bf16.msra.mxu0 %v1632
    %1739 = vmatprep.subr.bf16.mxu0 0
    %1740 = vmatpush1.bf16.msra.mxu0 %v1633
    %1741 = vmatprep.subr.bf16.mxu0 0
    %1742 = vmatpush1.bf16.msra.mxu0 %v1634
    %1743 = vmatprep.subr.bf16.mxu0 0
    %1744 = vmatpush1.bf16.msra.mxu0 %v1635
    %1745 = vmatprep.subr.bf16.mxu0 0
    %1746 = vmatpush1.bf16.msra.mxu0 %v1636
    %1747 = vmatprep.subr.bf16.mxu0 0
    %1748 = vmatpush1.bf16.msra.mxu0 %v1637
    %1749 = vmatprep.subr.bf16.mxu0 0
    %1750 = vmatpush1.bf16.msra.mxu0 %v1638
    %1751 = vmatprep.subr.bf16.mxu0 0
    %1752 = vmatpush1.bf16.msra.mxu0 %v1639
    %1753 = vmatprep.subr.bf16.mxu0 0
    %1754 = vmatpush1.bf16.msra.mxu0 %v1640
    %1755 = vmatprep.subr.bf16.mxu0 0
    %1756 = vmatpush1.bf16.msra.mxu0 %v1641
    %1757 = vmatprep.subr.bf16.mxu0 0
    %1758 = vmatpush1.bf16.msra.mxu0 %v1642
    %1759 = vmatprep.subr.bf16.mxu0 0
    %1760 = vmatpush1.bf16.msra.mxu0 %v1643
    %1761 = vmatprep.subr.bf16.mxu0 0
    %1762 = vmatpush1.bf16.msra.mxu0 %v1644
    %1763 = vmatprep.subr.bf16.mxu0 0
    %1764 = vmatpush1.bf16.msra.mxu0 %v1645
    %1765 = vmatprep.subr.bf16.mxu0 0
    %1766 = vmatpush1.bf16.msra.mxu0 %v1646
    %1767 = vmatprep.mubr.bf16.mxu0 %v1367
    %1768 = vmatmul.mubr.bf16.gmra.mrb[0].mxu0 %v1366
    %v1769 = vpop.f32.mrb[0].mxu0
    %v1770 = vadd.f32 %v1730, %v1769
    %v1771 = vpop.f32.mrb[0].mxu0
    %v1772 = vpop.f32.mrb[0].mxu0
    %v1773 = vpop.f32.mrb[0].mxu0
    %1774 = vdwg.mxu0
    %1775 = vmatprep.subr.bf16.mxu0 0
    %1776 = vmatpush1.bf16.msra.mxu0 %v1647
    %1777 = vmatprep.subr.bf16.mxu0 0
    %1778 = vmatpush1.bf16.msra.mxu0 %v1648
    %1779 = vmatprep.subr.bf16.mxu0 0
    %1780 = vmatpush1.bf16.msra.mxu0 %v1649
    %1781 = vmatprep.subr.bf16.mxu0 0
    %1782 = vmatpush1.bf16.msra.mxu0 %v1650
    %1783 = vmatprep.subr.bf16.mxu0 0
    %1784 = vmatpush1.bf16.msra.mxu0 %v1651
    %1785 = vmatprep.subr.bf16.mxu0 0
    %1786 = vmatpush1.bf16.msra.mxu0 %v1652
    %1787 = vmatprep.subr.bf16.mxu0 0
    %1788 = vmatpush1.bf16.msra.mxu0 %v1653
    %1789 = vmatprep.subr.bf16.mxu0 0
    %1790 = vmatpush1.bf16.msra.mxu0 %v1654
    %1791 = vmatprep.subr.bf16.mxu0 0
    %1792 = vmatpush1.bf16.msra.mxu0 0
    %1793 = vmatprep.subr.bf16.mxu0 0
    %1794 = vmatpush1.bf16.msra.mxu0 0
    %1795 = vmatprep.subr.bf16.mxu0 0
    %1796 = vmatpush1.bf16.msra.mxu0 0
    %1797 = vmatprep.subr.bf16.mxu0 0
    %1798 = vmatpush1.bf16.msra.mxu0 0
    %1799 = vmatprep.subr.bf16.mxu0 0
    %1800 = vmatpush1.bf16.msra.mxu0 0
    %1801 = vmatprep.subr.bf16.mxu0 0
    %1802 = vmatpush1.bf16.msra.mxu0 0
    %1803 = vmatprep.subr.bf16.mxu0 0
    %1804 = vmatpush1.bf16.msra.mxu0 0
    %1805 = vmatprep.subr.bf16.mxu0 0
    %1806 = vmatpush1.bf16.msra.mxu0 0
    %1807 = vmatprep.mubr.bf16.mxu0 0
    %1808 = vmatmul.mubr.bf16.gmra.mrb[0].mxu0 %v869
    %v1809 = vpop.f32.mrb[0].mxu0
    %v1810 = vadd.f32 %v1770, %v1809
    %v1811 = vpop.f32.mrb[0].mxu0
    %v1812 = vpop.f32.mrb[0].mxu0
    %v1813 = vpop.f32.mrb[0].mxu0
    %1814 = vdwg.mxu0
    %1815 = vst [vmem:[%s12] sm:$0xff] %v1810
    %v1816 = vld [vmem:[%s2] sm:$0xff]
    %v1817 = vlog2.pop %v1816
    %v1818 = vmul.f32 %v1817, 0.6931472
    %v1819 = vmax.f32 %v1818, -3.4028235e+38
    %v1820 = vadd.f32 %v1810, %v1819
    %vm1821 = vcmask 64512
    %1822 = vst.msk [vmem:[%s12] sm:$0xff] %vm1821, %v1820
    // Predicated region
    $region70: #{fused_forward.1} parent=1 // pred_check
      _
    $region71: #{fused_forward.1} parent=1 // pred_check_branch
      %1824 = sbr.rel (0) target = $region73
    $region72: #{fused_forward.1} parent=1 // pred_region
      _
    $region73: #{fused_forward.1} parent=1 // pred_fallthru
      _
    // Predicated region
    $region74: #{fused_forward.1} parent=1 // pred_check
      _
    $region75: #{fused_forward.1} parent=1 // pred_check_branch
      %1826 = sbr.rel (0) target = $region77
    $region76: #{fused_forward.1} parent=1 // pred_region
      _
    $region77: #{fused_forward.1} parent=1 // pred_fallthru
      _
    %1827 = vsyncpa [#allocation3], 1
    %1828 = vsyncpa [#allocation5], 1
    %1829 = vsyncpa [#allocation8], 1

</llo_original>
